<compile_context>
chip_gen: v7x
topology: tpu7x:2x2x1
jax: 0.10.0
libtpu: 0.0.40
codegen_flags: <defaults>
</compile_context>

<pallas_src>
import math
from functools import partial

import jax
import jax.numpy as jnp
from jax.experimental import pallas as pl
from jax.experimental.pallas import tpu as pltpu


# ----------------------------- kernel helpers --------------------------------

def _norm(z, alpha, bias, eps, d):
    # Matches torch Norm: mean over last dim, std with Bessel correction (d-1),
    # eps added to std (not variance).  1/(std+eps) on the EUP.
    mean = jnp.mean(z, axis=-1, keepdims=True)
    diff = z - mean
    var = jnp.sum(diff * diff, axis=-1, keepdims=True) * (1.0 / (d - 1))
    std = jnp.sqrt(var)
    inv = pl.reciprocal(std + eps, approx=True)
    return alpha * diff * inv + bias


# ----------------------------- fused encoder kernel ---------------------------

def encoder_kernel(x_hbm_ref,
                   wqkv_ref, bqkv_ref, wo_ref, bo_ref,
                   a1_ref, g1_ref,
                   w1_ref, b1_ref, w2_ref, b2_ref,
                   a2_ref, g2_ref,
                   fa_ref, fb_ref,
                   o_ref,
                   dma_sem,
                   *, tb, seq, heads, d_k, eps):
    bt = pl.program_id(0)
    layer = pl.program_id(1)
    last = pl.num_programs(1) - 1
    d_model = heads * d_k
    m = tb * seq

    # Layer 0 of each batch tile: DMA the input slab straight from HBM into the
    # resident output accumulator (constant output block index over the layer
    # axis => it stays in VMEM across layers, one HBM writeback at the end).
    @pl.when(layer == 0)
    def _():
        cp = pltpu.make_async_copy(x_hbm_ref.at[bt], o_ref, dma_sem)
        cp.start()
        cp.wait()

    x = o_ref[...]                                     # (m, D) f32 activations
    xb = x.astype(jnp.bfloat16)

    # --- multi-head self attention ---
    # Fused QKV projection: one lane-dense (m, D) @ (D, 3D) MXU pass.
    # 1/sqrt(d_k) is already folded into the Q weight/bias.
    qkv = jnp.dot(xb, wqkv_ref[...],
                  preferred_element_type=jnp.float32) + bqkv_ref[...]

    # Per-head score/softmax/context (3-D batched einsums over the batch tile);
    # heads are statically unrolled (multi-batch-dim dot_general / 4-D relayout
    # transposes are avoided for robust Mosaic lowering).
    # TODO(synk): optional attention mask (mask=None path only); dropout = identity.
    # TODO(synk): for long sequences, tile the KV axis with online softmax
    #             (flash pattern) instead of materializing (tb, S, S) scores.
    ctx_heads = []
    for h in range(heads):
        lo = h * d_k
        qh = qkv[:, lo:lo + d_k].reshape(tb, seq, d_k).astype(jnp.bfloat16)
        kh = qkv[:, d_model + lo:d_model + lo + d_k] \
            .reshape(tb, seq, d_k).astype(jnp.bfloat16)
        vh = qkv[:, 2 * d_model + lo:2 * d_model + lo + d_k] \
            .reshape(tb, seq, d_k).astype(jnp.bfloat16)
        s = jnp.einsum('bqd,bkd->bqk', qh, kh,
                       preferred_element_type=jnp.float32)   # (tb, S, S) f32
        s = s - jnp.max(s, axis=-1, keepdims=True)
        p = jnp.exp(s)
        p = p * pl.reciprocal(jnp.sum(p, axis=-1, keepdims=True), approx=True)
        ctx = jnp.einsum('bqk,bkd->bqd', p.astype(jnp.bfloat16), vh,
                         preferred_element_type=jnp.float32)  # (tb, S, d_k)
        ctx_heads.append(ctx.reshape(m, d_k))

    # Re-concatenated context -> ONE lane-dense D-contraction output projection.
    concat = jnp.concatenate(ctx_heads, axis=-1).astype(jnp.bfloat16)  # (m, D)
    attn = jnp.dot(concat, wo_ref[...],
                   preferred_element_type=jnp.float32) + bo_ref[...]

    x1 = _norm(x + attn, a1_ref[...], g1_ref[...], eps, d_model)

    # --- feed forward ---
    # TODO(synk): for large d_ff on v7x (64 MiB VMEM), stream w1/w2 in d_ff chunks.
    h1 = jnp.maximum(
        jnp.dot(x1.astype(jnp.bfloat16), w1_ref[...],
                preferred_element_type=jnp.float32) + b1_ref[...], 0.0)
    ff = jnp.dot(h1.astype(jnp.bfloat16), w2_ref[...],
                 preferred_element_type=jnp.float32) + b2_ref[...]

    x2 = _norm(x1 + ff, a2_ref[...], g2_ref[...], eps, d_model)

    # Keep activations resident in the output block; apply the final Norm on
    # the last layer only (single HBM writeback happens at tile/grid end).
    @pl.when(layer != last)
    def _():
        o_ref[...] = x2

    @pl.when(layer == last)
    def _():
        o_ref[...] = _norm(x2, fa_ref[...], fb_ref[...], eps, d_model)


# ----------------------------- wrapper ----------------------------------------

def encoder_forward(src, params, heads, eps=1e-6, tile_b=1):
    embed = params['embed']
    pe = params['pe']
    B, S = src.shape
    D = embed.shape[1]
    assert B % tile_b == 0, "batch must be divisible by tile_b"
    n_bt = B // tile_b
    m = tile_b * S
    assert m % 8 == 0, "tile rows (tile_b * seq) must be a multiple of 8"

    # Embedding gather + positional encoding (plain-JAX glue).
    x = embed[src] * math.sqrt(D) + pe[:S][None, :, :]
    x3d = x.reshape(n_bt, m, D).astype(jnp.float32)     # batch-tiled input slab

    L = params['layers']
    N = L['wqkv'].shape[0]
    d_k = D // heads
    d_ff = L['w1'].shape[-1]

    weight_order = ('wqkv', 'bqkv', 'wo', 'bo', 'a1', 'g1',
                    'w1', 'b1', 'w2', 'b2', 'a2', 'g2')
    weights = [L[name] for name in weight_order]

    def layer_spec(arr):
        nd = arr.ndim
        return pl.BlockSpec((None,) + arr.shape[1:],
                            lambda bt, l, nd=nd: (l,) + (0,) * (nd - 1))

    in_specs = [pl.BlockSpec(memory_space=pl.ANY)]       # token slab stays in HBM
    in_specs += [layer_spec(w) for w in weights]
    in_specs += [pl.BlockSpec((1, D), lambda bt, l: (0, 0)),   # final norm alpha
                 pl.BlockSpec((1, D), lambda bt, l: (0, 0))]   # final norm bias

    # Deliberate VMEM budget: double-buffered per-layer weights + resident
    # activations/output + intermediates headroom; clamp under v7x's 64 MiB.
    wbytes = sum(math.prod(w.shape[1:]) * w.dtype.itemsize for w in weights)
    act_bytes = m * D * 4
    inter_bytes = m * (3 * D + d_ff) * 4 + heads * tile_b * S * S * 4
    budget = 2 * wbytes + 4 * act_bytes + 2 * inter_bytes + (8 << 20)
    vmem_limit = int(min(max(budget, 16 << 20), 64 << 20))

    out2d = pl.pallas_call(
        partial(encoder_kernel, tb=tile_b, seq=S, heads=heads, d_k=d_k, eps=eps),
        out_shape=jax.ShapeDtypeStruct((B * S, D), jnp.float32),
        grid_spec=pltpu.PrefetchScalarGridSpec(
            num_scalar_prefetch=0,
            grid=(n_bt, N),                              # (batch tiles, layers)
            in_specs=in_specs,
            out_specs=pl.BlockSpec((m, D), lambda bt, l: (bt, 0)),
            scratch_shapes=[pltpu.SemaphoreType.DMA(())],
        ),
        compiler_params=pltpu.CompilerParams(
            dimension_semantics=("parallel", "arbitrary"),
            vmem_limit_bytes=vmem_limit),
    )(x3d, *weights, params['norm_alpha'], params['norm_bias'])

    return out2d.reshape(B, S, D)


# ----------------------------- parameter setup --------------------------------

def make_pe(max_seq_len, d_model):
    pos = jnp.arange(max_seq_len, dtype=jnp.float32)[:, None]
    idx = jnp.arange(d_model)
    even_i = (2.0 * jnp.floor(idx.astype(jnp.float32) / 2.0))[None, :]
    angle = pos / jnp.power(10000.0, even_i / d_model)
    pe = jnp.where((idx % 2) == 0, jnp.sin(angle), jnp.cos(angle))
    return pe  # (max_seq_len, d_model)


def init_params(key, vocab_size, d_model, N, heads, d_ff):
    d_k = d_model // heads
    keys = jax.random.split(key, 1 + 6 * N)
    ki = iter(keys[1:])

    def lin(k, din, dout):
        k1, k2 = jax.random.split(k)
        bound = 1.0 / math.sqrt(din)
        w = jax.random.uniform(k1, (din, dout), jnp.float32, -bound, bound)
        b = jax.random.uniform(k2, (1, dout), jnp.float32, -bound, bound)
        return w, b

    scale = 1.0 / math.sqrt(d_k)   # fold score scaling into the Q projection
    per_layer = []
    for _ in range(N):
        wq, bq = lin(next(ki), d_model, d_model)
        wk, bk = lin(next(ki), d_model, d_model)
        wv, bv = lin(next(ki), d_model, d_model)
        wo, bo = lin(next(ki), d_model, d_model)
        w1, b1 = lin(next(ki), d_model, d_ff)
        w2, b2 = lin(next(ki), d_ff, d_model)
        # Fused QKV weight (D, 3D); scaling both Wq and bq by 1/sqrt(d_k) is
        # identical to dividing the attention scores by sqrt(d_k).
        wqkv = jnp.concatenate([wq * scale, wk, wv], axis=1)
        bqkv = jnp.concatenate([bq * scale, bk, bv], axis=1)
        per_layer.append(dict(
            wqkv=wqkv.astype(jnp.bfloat16), bqkv=bqkv,
            wo=wo.astype(jnp.bfloat16), bo=bo,
            a1=jnp.ones((1, d_model), jnp.float32),
            g1=jnp.zeros((1, d_model), jnp.float32),
            w1=w1.astype(jnp.bfloat16), b1=b1,
            w2=w2.astype(jnp.bfloat16), b2=b2,
            a2=jnp.ones((1, d_model), jnp.float32),
            g2=jnp.zeros((1, d_model), jnp.float32)))

    stacked = {k: jnp.stack([lp[k] for lp in per_layer], axis=0)
               for k in per_layer[0]}

    return {
        'embed': jax.random.normal(keys[0], (vocab_size, d_model), jnp.float32),
        'pe': make_pe(80, d_model),
        'norm_alpha': jnp.ones((1, d_model), jnp.float32),
        'norm_bias': jnp.zeros((1, d_model), jnp.float32),
        'layers': stacked,
    }


# ----------------------------- main -------------------------------------------

if __name__ == "__main__":
    # Lane-dense small config: d_model multiple of 128, B*S multiple of 8.
    vocab_size, d_model, N, heads, d_ff = 50, 128, 2, 4, 256
    batch, seq = 2, 8

    key = jax.random.PRNGKey(0)
    k_params, k_src = jax.random.split(key)
    params = init_params(k_params, vocab_size, d_model, N, heads, d_ff)
    src = jax.random.randint(k_src, (batch, seq), 0, vocab_size, dtype=jnp.int32)

    out = encoder_forward(src, params, heads, tile_b=1)
    jax.block_until_ready(out)
    assert out.shape == (batch, seq, d_model)
    assert bool(jnp.all(jnp.isfinite(out)))
    print("KERNEL_OK")
</pallas_src>

<mosaic_0001>
module attributes {stable_mosaic.version = 11 : i64} {
  func.func @encoder_kernel(%arg0: i32, %arg1: i32, %arg2: memref<2x8x128xf32, #tpu.memory_space<any>>, %arg3: memref<1x128x384xbf16, #tpu.memory_space<vmem>>, %arg4: memref<1x1x384xf32, #tpu.memory_space<vmem>>, %arg5: memref<1x128x128xbf16, #tpu.memory_space<vmem>>, %arg6: memref<1x1x128xf32, #tpu.memory_space<vmem>>, %arg7: memref<1x1x128xf32, #tpu.memory_space<vmem>>, %arg8: memref<1x1x128xf32, #tpu.memory_space<vmem>>, %arg9: memref<1x128x256xbf16, #tpu.memory_space<vmem>>, %arg10: memref<1x1x256xf32, #tpu.memory_space<vmem>>, %arg11: memref<1x256x128xbf16, #tpu.memory_space<vmem>>, %arg12: memref<1x1x128xf32, #tpu.memory_space<vmem>>, %arg13: memref<1x1x128xf32, #tpu.memory_space<vmem>>, %arg14: memref<1x1x128xf32, #tpu.memory_space<vmem>>, %arg15: memref<1x128xf32, #tpu.memory_space<vmem>>, %arg16: memref<1x128xf32, #tpu.memory_space<vmem>>, %arg17: memref<8x128xf32, #tpu.memory_space<vmem>>, %arg18: memref<!tpu.dma_semaphore, #tpu.memory_space<semaphore_mem>>) attributes {dimension_semantics = [#tpu.dimension_semantics<parallel>, #tpu.dimension_semantics<arbitrary>], iteration_bounds = array<i64: 2, 2>, scalar_prefetch = 0 : i64, scratch_operands = 1 : i64, tpu.core_type = #tpu.core_type<tc>, window_params = [{}, {transform_indices = @transform_1, window_bounds = array<i64: 1, 128, 384>}, {transform_indices = @transform_2, window_bounds = array<i64: 1, 1, 384>}, {transform_indices = @transform_3, window_bounds = array<i64: 1, 128, 128>}, {transform_indices = @transform_4, window_bounds = array<i64: 1, 1, 128>}, {transform_indices = @transform_5, window_bounds = array<i64: 1, 1, 128>}, {transform_indices = @transform_6, window_bounds = array<i64: 1, 1, 128>}, {transform_indices = @transform_7, window_bounds = array<i64: 1, 128, 256>}, {transform_indices = @transform_8, window_bounds = array<i64: 1, 1, 256>}, {transform_indices = @transform_9, window_bounds = array<i64: 1, 256, 128>}, {transform_indices = @transform_10, window_bounds = array<i64: 1, 1, 128>}, {transform_indices = @transform_11, window_bounds = array<i64: 1, 1, 128>}, {transform_indices = @transform_12, window_bounds = array<i64: 1, 1, 128>}, {pipeline_mode = #tpu.pipeline_mode<synchronous>, transform_indices = @transform_13, window_bounds = array<i64: 1, 128>}, {pipeline_mode = #tpu.pipeline_mode<synchronous>, transform_indices = @transform_14, window_bounds = array<i64: 1, 128>}, {transform_indices = @transform_15, window_bounds = array<i64: 8, 128>}]} {
    %c0_i32 = arith.constant 0 : i32
    %0 = arith.cmpi eq, %arg1, %c0_i32 : i32
    %1 = arith.extui %0 : i1 to i32
    %c0_i32_0 = arith.constant 0 : i32
    %2 = arith.cmpi ne, %1, %c0_i32_0 : i32
    scf.if %2 {
      %c0_i32_71 = arith.constant 0 : i32
      %c0_i32_72 = arith.constant 0 : i32
      %189 = tpu.memref_slice %arg2[%arg0, %c0_i32_71, %c0_i32_72] : memref<2x8x128xf32, #tpu.memory_space<any>> -> memref<1x8x128xf32, #tpu.memory_space<any>>
      %190 = tpu.memref_squeeze %189 : memref<1x8x128xf32, #tpu.memory_space<any>> -> memref<8x128xf32, #tpu.memory_space<any>>
      tpu.enqueue_dma source(%190 : memref<8x128xf32, #tpu.memory_space<any>>) target(%arg17 : memref<8x128xf32, #tpu.memory_space<vmem>>) target_semaphore(%arg18 : memref<!tpu.dma_semaphore, #tpu.memory_space<semaphore_mem>>)
      %c0_i32_73 = arith.constant 0 : i32
      %c0_i32_74 = arith.constant 0 : i32
      %191 = tpu.memref_slice %arg2[%arg0, %c0_i32_73, %c0_i32_74] : memref<2x8x128xf32, #tpu.memory_space<any>> -> memref<1x8x128xf32, #tpu.memory_space<any>>
      %192 = tpu.memref_squeeze %191 : memref<1x8x128xf32, #tpu.memory_space<any>> -> memref<8x128xf32, #tpu.memory_space<any>>
      tpu.wait_dma2 semaphore(%arg18 : memref<!tpu.dma_semaphore, #tpu.memory_space<semaphore_mem>>) src(%192 : memref<8x128xf32, #tpu.memory_space<any>>) dst(%arg17 : memref<8x128xf32, #tpu.memory_space<vmem>>)
    } else {
    }
    %c0 = arith.constant 0 : index
    %c0_1 = arith.constant 0 : index
    %3 = vector.load %arg17[%c0, %c0_1] : memref<8x128xf32, #tpu.memory_space<vmem>>, vector<8x128xf32>
    %4 = arith.truncf %3 : vector<8x128xf32> to vector<8x128xbf16>
    %c0_2 = arith.constant 0 : index
    %c0_3 = arith.constant 0 : index
    %c0_4 = arith.constant 0 : index
    %5 = vector.load %arg3[%c0_2, %c0_3, %c0_4] : memref<1x128x384xbf16, #tpu.memory_space<vmem>>, vector<1x128x384xbf16>
    %6 = vector.shape_cast %5 : vector<1x128x384xbf16> to vector<128x384xbf16>
    %cst = arith.constant dense<0.000000e+00> : vector<8x384xf32>
    %7 = tpu.matmul %4, %6, %cst {dimension_numbers = #tpu.dot_dimension_numbers<[1], [0], [0], [1], [0, 0, 1, 1], [], []>} : vector<8x128xbf16>, vector<128x384xbf16>, vector<8x384xf32> -> vector<8x384xf32>
    %c0_5 = arith.constant 0 : index
    %c0_6 = arith.constant 0 : index
    %c0_7 = arith.constant 0 : index
    %8 = vector.load %arg4[%c0_5, %c0_6, %c0_7] : memref<1x1x384xf32, #tpu.memory_space<vmem>>, vector<1x1x384xf32>
    %9 = vector.shape_cast %8 : vector<1x1x384xf32> to vector<1x384xf32>
    %10 = vector.broadcast %9 : vector<1x384xf32> to vector<8x384xf32>
    %11 = arith.addf %7, %10 : vector<8x384xf32>
    %12 = vector.extract_strided_slice %11 {offsets = [0, 0], sizes = [8, 32], strides = [1, 1]} : vector<8x384xf32> to vector<8x32xf32>
    %13 = vector.shape_cast %12 : vector<8x32xf32> to vector<1x8x32xf32>
    %14 = arith.truncf %13 : vector<1x8x32xf32> to vector<1x8x32xbf16>
    %15 = vector.extract_strided_slice %11 {offsets = [0, 128], sizes = [8, 32], strides = [1, 1]} : vector<8x384xf32> to vector<8x32xf32>
    %16 = vector.shape_cast %15 : vector<8x32xf32> to vector<1x8x32xf32>
    %17 = arith.truncf %16 : vector<1x8x32xf32> to vector<1x8x32xbf16>
    %18 = vector.extract_strided_slice %11 {offsets = [0, 256], sizes = [8, 32], strides = [1, 1]} : vector<8x384xf32> to vector<8x32xf32>
    %19 = vector.shape_cast %18 : vector<8x32xf32> to vector<1x8x32xf32>
    %20 = arith.truncf %19 : vector<1x8x32xf32> to vector<1x8x32xbf16>
    "tpu.trace_start"() <{level = 10 : i32, message = "bqd,bkd->bqk"}> : () -> ()
    %cst_8 = arith.constant dense<0.000000e+00> : vector<1x8x8xf32>
    %21 = tpu.matmul %14, %17, %cst_8 {dimension_numbers = #tpu.dot_dimension_numbers<[2], [2], [1], [1], [0, 0, 0, 1, 1, 1], [0], [0]>} : vector<1x8x32xbf16>, vector<1x8x32xbf16>, vector<1x8x8xf32> -> vector<1x8x8xf32>
    "tpu.trace_stop"() : () -> ()
    %cst_9 = arith.constant dense<0xFF800000> : vector<1x8xf32>
    %22 = vector.multi_reduction <maximumf>, %21, %cst_9 [2] : vector<1x8x8xf32> to vector<1x8xf32>
    %23 = vector.shape_cast %22 : vector<1x8xf32> to vector<1x8x1xf32>
    %24 = vector.broadcast %23 : vector<1x8x1xf32> to vector<1x8x8xf32>
    %25 = arith.subf %21, %24 : vector<1x8x8xf32>
    %26 = math.exp %25 : vector<1x8x8xf32>
    %cst_10 = arith.constant dense<0.000000e+00> : vector<1x8xf32>
    %27 = vector.multi_reduction <add>, %26, %cst_10 [2] : vector<1x8x8xf32> to vector<1x8xf32>
    %28 = vector.shape_cast %27 : vector<1x8xf32> to vector<1x8x1xf32>
    %29 = tpu.reciprocal %28 {approx = true} : vector<1x8x1xf32> -> vector<1x8x1xf32>
    %30 = vector.broadcast %29 : vector<1x8x1xf32> to vector<1x8x8xf32>
    %31 = arith.mulf %26, %30 : vector<1x8x8xf32>
    %32 = arith.truncf %31 : vector<1x8x8xf32> to vector<1x8x8xbf16>
    "tpu.trace_start"() <{level = 10 : i32, message = "bqk,bkd->bqd"}> : () -> ()
    %cst_11 = arith.constant dense<0.000000e+00> : vector<1x8x32xf32>
    %33 = tpu.matmul %32, %20, %cst_11 {dimension_numbers = #tpu.dot_dimension_numbers<[2], [1], [1], [2], [0, 0, 0, 1, 1, 2], [0], [0]>} : vector<1x8x8xbf16>, vector<1x8x32xbf16>, vector<1x8x32xf32> -> vector<1x8x32xf32>
    "tpu.trace_stop"() : () -> ()
    %34 = vector.shape_cast %33 : vector<1x8x32xf32> to vector<8x32xf32>
    %35 = vector.extract_strided_slice %11 {offsets = [0, 32], sizes = [8, 32], strides = [1, 1]} : vector<8x384xf32> to vector<8x32xf32>
    %36 = vector.shape_cast %35 : vector<8x32xf32> to vector<1x8x32xf32>
    %37 = arith.truncf %36 : vector<1x8x32xf32> to vector<1x8x32xbf16>
    %38 = vector.extract_strided_slice %11 {offsets = [0, 160], sizes = [8, 32], strides = [1, 1]} : vector<8x384xf32> to vector<8x32xf32>
    %39 = vector.shape_cast %38 : vector<8x32xf32> to vector<1x8x32xf32>
    %40 = arith.truncf %39 : vector<1x8x32xf32> to vector<1x8x32xbf16>
    %41 = vector.extract_strided_slice %11 {offsets = [0, 288], sizes = [8, 32], strides = [1, 1]} : vector<8x384xf32> to vector<8x32xf32>
    %42 = vector.shape_cast %41 : vector<8x32xf32> to vector<1x8x32xf32>
    %43 = arith.truncf %42 : vector<1x8x32xf32> to vector<1x8x32xbf16>
    "tpu.trace_start"() <{level = 10 : i32, message = "bqd,bkd->bqk"}> : () -> ()
    %cst_12 = arith.constant dense<0.000000e+00> : vector<1x8x8xf32>
    %44 = tpu.matmul %37, %40, %cst_12 {dimension_numbers = #tpu.dot_dimension_numbers<[2], [2], [1], [1], [0, 0, 0, 1, 1, 1], [0], [0]>} : vector<1x8x32xbf16>, vector<1x8x32xbf16>, vector<1x8x8xf32> -> vector<1x8x8xf32>
    "tpu.trace_stop"() : () -> ()
    %cst_13 = arith.constant dense<0xFF800000> : vector<1x8xf32>
    %45 = vector.multi_reduction <maximumf>, %44, %cst_13 [2] : vector<1x8x8xf32> to vector<1x8xf32>
    %46 = vector.shape_cast %45 : vector<1x8xf32> to vector<1x8x1xf32>
    %47 = vector.broadcast %46 : vector<1x8x1xf32> to vector<1x8x8xf32>
    %48 = arith.subf %44, %47 : vector<1x8x8xf32>
    %49 = math.exp %48 : vector<1x8x8xf32>
    %cst_14 = arith.constant dense<0.000000e+00> : vector<1x8xf32>
    %50 = vector.multi_reduction <add>, %49, %cst_14 [2] : vector<1x8x8xf32> to vector<1x8xf32>
    %51 = vector.shape_cast %50 : vector<1x8xf32> to vector<1x8x1xf32>
    %52 = tpu.reciprocal %51 {approx = true} : vector<1x8x1xf32> -> vector<1x8x1xf32>
    %53 = vector.broadcast %52 : vector<1x8x1xf32> to vector<1x8x8xf32>
    %54 = arith.mulf %49, %53 : vector<1x8x8xf32>
    %55 = arith.truncf %54 : vector<1x8x8xf32> to vector<1x8x8xbf16>
    "tpu.trace_start"() <{level = 10 : i32, message = "bqk,bkd->bqd"}> : () -> ()
    %cst_15 = arith.constant dense<0.000000e+00> : vector<1x8x32xf32>
    %56 = tpu.matmul %55, %43, %cst_15 {dimension_numbers = #tpu.dot_dimension_numbers<[2], [1], [1], [2], [0, 0, 0, 1, 1, 2], [0], [0]>} : vector<1x8x8xbf16>, vector<1x8x32xbf16>, vector<1x8x32xf32> -> vector<1x8x32xf32>
    "tpu.trace_stop"() : () -> ()
    %57 = vector.shape_cast %56 : vector<1x8x32xf32> to vector<8x32xf32>
    %58 = vector.extract_strided_slice %11 {offsets = [0, 64], sizes = [8, 32], strides = [1, 1]} : vector<8x384xf32> to vector<8x32xf32>
    %59 = vector.shape_cast %58 : vector<8x32xf32> to vector<1x8x32xf32>
    %60 = arith.truncf %59 : vector<1x8x32xf32> to vector<1x8x32xbf16>
    %61 = vector.extract_strided_slice %11 {offsets = [0, 192], sizes = [8, 32], strides = [1, 1]} : vector<8x384xf32> to vector<8x32xf32>
    %62 = vector.shape_cast %61 : vector<8x32xf32> to vector<1x8x32xf32>
    %63 = arith.truncf %62 : vector<1x8x32xf32> to vector<1x8x32xbf16>
    %64 = vector.extract_strided_slice %11 {offsets = [0, 320], sizes = [8, 32], strides = [1, 1]} : vector<8x384xf32> to vector<8x32xf32>
    %65 = vector.shape_cast %64 : vector<8x32xf32> to vector<1x8x32xf32>
    %66 = arith.truncf %65 : vector<1x8x32xf32> to vector<1x8x32xbf16>
    "tpu.trace_start"() <{level = 10 : i32, message = "bqd,bkd->bqk"}> : () -> ()
    %cst_16 = arith.constant dense<0.000000e+00> : vector<1x8x8xf32>
    %67 = tpu.matmul %60, %63, %cst_16 {dimension_numbers = #tpu.dot_dimension_numbers<[2], [2], [1], [1], [0, 0, 0, 1, 1, 1], [0], [0]>} : vector<1x8x32xbf16>, vector<1x8x32xbf16>, vector<1x8x8xf32> -> vector<1x8x8xf32>
    "tpu.trace_stop"() : () -> ()
    %cst_17 = arith.constant dense<0xFF800000> : vector<1x8xf32>
    %68 = vector.multi_reduction <maximumf>, %67, %cst_17 [2] : vector<1x8x8xf32> to vector<1x8xf32>
    %69 = vector.shape_cast %68 : vector<1x8xf32> to vector<1x8x1xf32>
    %70 = vector.broadcast %69 : vector<1x8x1xf32> to vector<1x8x8xf32>
    %71 = arith.subf %67, %70 : vector<1x8x8xf32>
    %72 = math.exp %71 : vector<1x8x8xf32>
    %cst_18 = arith.constant dense<0.000000e+00> : vector<1x8xf32>
    %73 = vector.multi_reduction <add>, %72, %cst_18 [2] : vector<1x8x8xf32> to vector<1x8xf32>
    %74 = vector.shape_cast %73 : vector<1x8xf32> to vector<1x8x1xf32>
    %75 = tpu.reciprocal %74 {approx = true} : vector<1x8x1xf32> -> vector<1x8x1xf32>
    %76 = vector.broadcast %75 : vector<1x8x1xf32> to vector<1x8x8xf32>
    %77 = arith.mulf %72, %76 : vector<1x8x8xf32>
    %78 = arith.truncf %77 : vector<1x8x8xf32> to vector<1x8x8xbf16>
    "tpu.trace_start"() <{level = 10 : i32, message = "bqk,bkd->bqd"}> : () -> ()
    %cst_19 = arith.constant dense<0.000000e+00> : vector<1x8x32xf32>
    %79 = tpu.matmul %78, %66, %cst_19 {dimension_numbers = #tpu.dot_dimension_numbers<[2], [1], [1], [2], [0, 0, 0, 1, 1, 2], [0], [0]>} : vector<1x8x8xbf16>, vector<1x8x32xbf16>, vector<1x8x32xf32> -> vector<1x8x32xf32>
    "tpu.trace_stop"() : () -> ()
    %80 = vector.shape_cast %79 : vector<1x8x32xf32> to vector<8x32xf32>
    %81 = vector.extract_strided_slice %11 {offsets = [0, 96], sizes = [8, 32], strides = [1, 1]} : vector<8x384xf32> to vector<8x32xf32>
    %82 = vector.shape_cast %81 : vector<8x32xf32> to vector<1x8x32xf32>
    %83 = arith.truncf %82 : vector<1x8x32xf32> to vector<1x8x32xbf16>
    %84 = vector.extract_strided_slice %11 {offsets = [0, 224], sizes = [8, 32], strides = [1, 1]} : vector<8x384xf32> to vector<8x32xf32>
    %85 = vector.shape_cast %84 : vector<8x32xf32> to vector<1x8x32xf32>
    %86 = arith.truncf %85 : vector<1x8x32xf32> to vector<1x8x32xbf16>
    %87 = vector.extract_strided_slice %11 {offsets = [0, 352], sizes = [8, 32], strides = [1, 1]} : vector<8x384xf32> to vector<8x32xf32>
    %88 = vector.shape_cast %87 : vector<8x32xf32> to vector<1x8x32xf32>
    %89 = arith.truncf %88 : vector<1x8x32xf32> to vector<1x8x32xbf16>
    "tpu.trace_start"() <{level = 10 : i32, message = "bqd,bkd->bqk"}> : () -> ()
    %cst_20 = arith.constant dense<0.000000e+00> : vector<1x8x8xf32>
    %90 = tpu.matmul %83, %86, %cst_20 {dimension_numbers = #tpu.dot_dimension_numbers<[2], [2], [1], [1], [0, 0, 0, 1, 1, 1], [0], [0]>} : vector<1x8x32xbf16>, vector<1x8x32xbf16>, vector<1x8x8xf32> -> vector<1x8x8xf32>
    "tpu.trace_stop"() : () -> ()
    %cst_21 = arith.constant dense<0xFF800000> : vector<1x8xf32>
    %91 = vector.multi_reduction <maximumf>, %90, %cst_21 [2] : vector<1x8x8xf32> to vector<1x8xf32>
    %92 = vector.shape_cast %91 : vector<1x8xf32> to vector<1x8x1xf32>
    %93 = vector.broadcast %92 : vector<1x8x1xf32> to vector<1x8x8xf32>
    %94 = arith.subf %90, %93 : vector<1x8x8xf32>
    %95 = math.exp %94 : vector<1x8x8xf32>
    %cst_22 = arith.constant dense<0.000000e+00> : vector<1x8xf32>
    %96 = vector.multi_reduction <add>, %95, %cst_22 [2] : vector<1x8x8xf32> to vector<1x8xf32>
    %97 = vector.shape_cast %96 : vector<1x8xf32> to vector<1x8x1xf32>
    %98 = tpu.reciprocal %97 {approx = true} : vector<1x8x1xf32> -> vector<1x8x1xf32>
    %99 = vector.broadcast %98 : vector<1x8x1xf32> to vector<1x8x8xf32>
    %100 = arith.mulf %95, %99 : vector<1x8x8xf32>
    %101 = arith.truncf %100 : vector<1x8x8xf32> to vector<1x8x8xbf16>
    "tpu.trace_start"() <{level = 10 : i32, message = "bqk,bkd->bqd"}> : () -> ()
    %cst_23 = arith.constant dense<0.000000e+00> : vector<1x8x32xf32>
    %102 = tpu.matmul %101, %89, %cst_23 {dimension_numbers = #tpu.dot_dimension_numbers<[2], [1], [1], [2], [0, 0, 0, 1, 1, 2], [0], [0]>} : vector<1x8x8xbf16>, vector<1x8x32xbf16>, vector<1x8x32xf32> -> vector<1x8x32xf32>
    "tpu.trace_stop"() : () -> ()
    %103 = vector.shape_cast %102 : vector<1x8x32xf32> to vector<8x32xf32>
    %104 = tpu.concatenate %34, %57, %80, %103 in 1 : vector<8x32xf32>, vector<8x32xf32>, vector<8x32xf32>, vector<8x32xf32> -> vector<8x128xf32>
    %105 = arith.truncf %104 : vector<8x128xf32> to vector<8x128xbf16>
    %c0_24 = arith.constant 0 : index
    %c0_25 = arith.constant 0 : index
    %c0_26 = arith.constant 0 : index
    %106 = vector.load %arg5[%c0_24, %c0_25, %c0_26] : memref<1x128x128xbf16, #tpu.memory_space<vmem>>, vector<1x128x128xbf16>
    %107 = vector.shape_cast %106 : vector<1x128x128xbf16> to vector<128x128xbf16>
    %cst_27 = arith.constant dense<0.000000e+00> : vector<8x128xf32>
    %108 = tpu.matmul %105, %107, %cst_27 {dimension_numbers = #tpu.dot_dimension_numbers<[1], [0], [0], [1], [0, 0, 1, 1], [], []>} : vector<8x128xbf16>, vector<128x128xbf16>, vector<8x128xf32> -> vector<8x128xf32>
    %c0_28 = arith.constant 0 : index
    %c0_29 = arith.constant 0 : index
    %c0_30 = arith.constant 0 : index
    %109 = vector.load %arg6[%c0_28, %c0_29, %c0_30] : memref<1x1x128xf32, #tpu.memory_space<vmem>>, vector<1x1x128xf32>
    %110 = vector.shape_cast %109 : vector<1x1x128xf32> to vector<1x128xf32>
    %111 = vector.broadcast %110 : vector<1x128xf32> to vector<8x128xf32>
    %112 = arith.addf %108, %111 : vector<8x128xf32>
    %113 = arith.addf %3, %112 : vector<8x128xf32>
    %c0_31 = arith.constant 0 : index
    %c0_32 = arith.constant 0 : index
    %c0_33 = arith.constant 0 : index
    %114 = vector.load %arg7[%c0_31, %c0_32, %c0_33] : memref<1x1x128xf32, #tpu.memory_space<vmem>>, vector<1x1x128xf32>
    %115 = vector.shape_cast %114 : vector<1x1x128xf32> to vector<1x128xf32>
    %c0_34 = arith.constant 0 : index
    %c0_35 = arith.constant 0 : index
    %c0_36 = arith.constant 0 : index
    %116 = vector.load %arg8[%c0_34, %c0_35, %c0_36] : memref<1x1x128xf32, #tpu.memory_space<vmem>>, vector<1x1x128xf32>
    %117 = vector.shape_cast %116 : vector<1x1x128xf32> to vector<1x128xf32>
    %cst_37 = arith.constant dense<0.000000e+00> : vector<8xf32>
    %118 = vector.multi_reduction <add>, %113, %cst_37 [1] : vector<8x128xf32> to vector<8xf32>
    %119 = vector.shape_cast %118 : vector<8xf32> to vector<8x1xf32>
    %cst_38 = arith.constant 1.280000e+02 : f32
    %120 = vector.broadcast %cst_38 : f32 to vector<8x1xf32>
    %121 = arith.divf %119, %120 : vector<8x1xf32>
    %122 = vector.broadcast %121 : vector<8x1xf32> to vector<8x128xf32>
    %123 = arith.subf %113, %122 : vector<8x128xf32>
    %124 = arith.mulf %123, %123 : vector<8x128xf32>
    %cst_39 = arith.constant dense<0.000000e+00> : vector<8xf32>
    %125 = vector.multi_reduction <add>, %124, %cst_39 [1] : vector<8x128xf32> to vector<8xf32>
    %126 = vector.shape_cast %125 : vector<8xf32> to vector<8x1xf32>
    %cst_40 = arith.constant 0.00787401571 : f32
    %127 = vector.broadcast %cst_40 : f32 to vector<8x1xf32>
    %128 = arith.mulf %126, %127 : vector<8x1xf32>
    %129 = math.sqrt %128 : vector<8x1xf32>
    %cst_41 = arith.constant 9.99999997E-7 : f32
    %130 = vector.broadcast %cst_41 : f32 to vector<8x1xf32>
    %131 = arith.addf %129, %130 : vector<8x1xf32>
    %132 = tpu.reciprocal %131 {approx = true} : vector<8x1xf32> -> vector<8x1xf32>
    %133 = vector.broadcast %115 : vector<1x128xf32> to vector<8x128xf32>
    %134 = arith.mulf %133, %123 : vector<8x128xf32>
    %135 = vector.broadcast %132 : vector<8x1xf32> to vector<8x128xf32>
    %136 = arith.mulf %134, %135 : vector<8x128xf32>
    %137 = vector.broadcast %117 : vector<1x128xf32> to vector<8x128xf32>
    %138 = arith.addf %136, %137 : vector<8x128xf32>
    %139 = arith.truncf %138 : vector<8x128xf32> to vector<8x128xbf16>
    %c0_42 = arith.constant 0 : index
    %c0_43 = arith.constant 0 : index
    %c0_44 = arith.constant 0 : index
    %140 = vector.load %arg9[%c0_42, %c0_43, %c0_44] : memref<1x128x256xbf16, #tpu.memory_space<vmem>>, vector<1x128x256xbf16>
    %141 = vector.shape_cast %140 : vector<1x128x256xbf16> to vector<128x256xbf16>
    %cst_45 = arith.constant dense<0.000000e+00> : vector<8x256xf32>
    %142 = tpu.matmul %139, %141, %cst_45 {dimension_numbers = #tpu.dot_dimension_numbers<[1], [0], [0], [1], [0, 0, 1, 1], [], []>} : vector<8x128xbf16>, vector<128x256xbf16>, vector<8x256xf32> -> vector<8x256xf32>
    %c0_46 = arith.constant 0 : index
    %c0_47 = arith.constant 0 : index
    %c0_48 = arith.constant 0 : index
    %143 = vector.load %arg10[%c0_46, %c0_47, %c0_48] : memref<1x1x256xf32, #tpu.memory_space<vmem>>, vector<1x1x256xf32>
    %144 = vector.shape_cast %143 : vector<1x1x256xf32> to vector<1x256xf32>
    %145 = vector.broadcast %144 : vector<1x256xf32> to vector<8x256xf32>
    %146 = arith.addf %142, %145 : vector<8x256xf32>
    %cst_49 = arith.constant 0.000000e+00 : f32
    %147 = vector.broadcast %cst_49 : f32 to vector<8x256xf32>
    %148 = arith.maximumf %146, %147 : vector<8x256xf32>
    %149 = arith.truncf %148 : vector<8x256xf32> to vector<8x256xbf16>
    %c0_50 = arith.constant 0 : index
    %c0_51 = arith.constant 0 : index
    %c0_52 = arith.constant 0 : index
    %150 = vector.load %arg11[%c0_50, %c0_51, %c0_52] : memref<1x256x128xbf16, #tpu.memory_space<vmem>>, vector<1x256x128xbf16>
    %151 = vector.shape_cast %150 : vector<1x256x128xbf16> to vector<256x128xbf16>
    %cst_53 = arith.constant dense<0.000000e+00> : vector<8x128xf32>
    %152 = tpu.matmul %149, %151, %cst_53 {dimension_numbers = #tpu.dot_dimension_numbers<[1], [0], [0], [1], [0, 0, 1, 1], [], []>} : vector<8x256xbf16>, vector<256x128xbf16>, vector<8x128xf32> -> vector<8x128xf32>
    %c0_54 = arith.constant 0 : index
    %c0_55 = arith.constant 0 : index
    %c0_56 = arith.constant 0 : index
    %153 = vector.load %arg12[%c0_54, %c0_55, %c0_56] : memref<1x1x128xf32, #tpu.memory_space<vmem>>, vector<1x1x128xf32>
    %154 = vector.shape_cast %153 : vector<1x1x128xf32> to vector<1x128xf32>
    %155 = vector.broadcast %154 : vector<1x128xf32> to vector<8x128xf32>
    %156 = arith.addf %152, %155 : vector<8x128xf32>
    %157 = arith.addf %138, %156 : vector<8x128xf32>
    %c0_57 = arith.constant 0 : index
    %c0_58 = arith.constant 0 : index
    %c0_59 = arith.constant 0 : index
    %158 = vector.load %arg13[%c0_57, %c0_58, %c0_59] : memref<1x1x128xf32, #tpu.memory_space<vmem>>, vector<1x1x128xf32>
    %159 = vector.shape_cast %158 : vector<1x1x128xf32> to vector<1x128xf32>
    %c0_60 = arith.constant 0 : index
    %c0_61 = arith.constant 0 : index
    %c0_62 = arith.constant 0 : index
    %160 = vector.load %arg14[%c0_60, %c0_61, %c0_62] : memref<1x1x128xf32, #tpu.memory_space<vmem>>, vector<1x1x128xf32>
    %161 = vector.shape_cast %160 : vector<1x1x128xf32> to vector<1x128xf32>
    %cst_63 = arith.constant dense<0.000000e+00> : vector<8xf32>
    %162 = vector.multi_reduction <add>, %157, %cst_63 [1] : vector<8x128xf32> to vector<8xf32>
    %163 = vector.shape_cast %162 : vector<8xf32> to vector<8x1xf32>
    %cst_64 = arith.constant 1.280000e+02 : f32
    %164 = vector.broadcast %cst_64 : f32 to vector<8x1xf32>
    %165 = arith.divf %163, %164 : vector<8x1xf32>
    %166 = vector.broadcast %165 : vector<8x1xf32> to vector<8x128xf32>
    %167 = arith.subf %157, %166 : vector<8x128xf32>
    %168 = arith.mulf %167, %167 : vector<8x128xf32>
    %cst_65 = arith.constant dense<0.000000e+00> : vector<8xf32>
    %169 = vector.multi_reduction <add>, %168, %cst_65 [1] : vector<8x128xf32> to vector<8xf32>
    %170 = vector.shape_cast %169 : vector<8xf32> to vector<8x1xf32>
    %cst_66 = arith.constant 0.00787401571 : f32
    %171 = vector.broadcast %cst_66 : f32 to vector<8x1xf32>
    %172 = arith.mulf %170, %171 : vector<8x1xf32>
    %173 = math.sqrt %172 : vector<8x1xf32>
    %cst_67 = arith.constant 9.99999997E-7 : f32
    %174 = vector.broadcast %cst_67 : f32 to vector<8x1xf32>
    %175 = arith.addf %173, %174 : vector<8x1xf32>
    %176 = tpu.reciprocal %175 {approx = true} : vector<8x1xf32> -> vector<8x1xf32>
    %177 = vector.broadcast %159 : vector<1x128xf32> to vector<8x128xf32>
    %178 = arith.mulf %177, %167 : vector<8x128xf32>
    %179 = vector.broadcast %176 : vector<8x1xf32> to vector<8x128xf32>
    %180 = arith.mulf %178, %179 : vector<8x128xf32>
    %181 = vector.broadcast %161 : vector<1x128xf32> to vector<8x128xf32>
    %182 = arith.addf %180, %181 : vector<8x128xf32>
    %c1_i32 = arith.constant 1 : i32
    %183 = arith.cmpi ne, %arg1, %c1_i32 : i32
    %184 = arith.extui %183 : i1 to i32
    %c0_i32_68 = arith.constant 0 : i32
    %185 = arith.cmpi ne, %184, %c0_i32_68 : i32
    scf.if %185 {
      %c0_71 = arith.constant 0 : index
      %c0_72 = arith.constant 0 : index
      %189 = vector.load %arg17[%c0_71, %c0_72] : memref<8x128xf32, #tpu.memory_space<vmem>>, vector<8x128xf32>
      tpu.vector_store %arg17[%c0_71, %c0_72], %182 {strides = array<i32>} : memref<8x128xf32, #tpu.memory_space<vmem>>, vector<8x128xf32>,
    } else {
    }
    %c1_i32_69 = arith.constant 1 : i32
    %186 = arith.cmpi eq, %arg1, %c1_i32_69 : i32
    %187 = arith.extui %186 : i1 to i32
    %c0_i32_70 = arith.constant 0 : i32
    %188 = arith.cmpi ne, %187, %c0_i32_70 : i32
    scf.if %188 {
      %c0_71 = arith.constant 0 : index
      %c0_72 = arith.constant 0 : index
      %189 = vector.load %arg15[%c0_71, %c0_72] : memref<1x128xf32, #tpu.memory_space<vmem>>, vector<1x128xf32>
      %c0_73 = arith.constant 0 : index
      %c0_74 = arith.constant 0 : index
      %190 = vector.load %arg16[%c0_73, %c0_74] : memref<1x128xf32, #tpu.memory_space<vmem>>, vector<1x128xf32>
      %cst_75 = arith.constant dense<0.000000e+00> : vector<8xf32>
      %191 = vector.multi_reduction <add>, %182, %cst_75 [1] : vector<8x128xf32> to vector<8xf32>
      %192 = vector.shape_cast %191 : vector<8xf32> to vector<8x1xf32>
      %cst_76 = arith.constant 1.280000e+02 : f32
      %193 = vector.broadcast %cst_76 : f32 to vector<8x1xf32>
      %194 = arith.divf %192, %193 : vector<8x1xf32>
      %195 = vector.broadcast %194 : vector<8x1xf32> to vector<8x128xf32>
      %196 = arith.subf %182, %195 : vector<8x128xf32>
      %197 = arith.mulf %196, %196 : vector<8x128xf32>
      %cst_77 = arith.constant dense<0.000000e+00> : vector<8xf32>
      %198 = vector.multi_reduction <add>, %197, %cst_77 [1] : vector<8x128xf32> to vector<8xf32>
      %199 = vector.shape_cast %198 : vector<8xf32> to vector<8x1xf32>
      %cst_78 = arith.constant 0.00787401571 : f32
      %200 = vector.broadcast %cst_78 : f32 to vector<8x1xf32>
      %201 = arith.mulf %199, %200 : vector<8x1xf32>
      %202 = math.sqrt %201 : vector<8x1xf32>
      %cst_79 = arith.constant 9.99999997E-7 : f32
      %203 = vector.broadcast %cst_79 : f32 to vector<8x1xf32>
      %204 = arith.addf %202, %203 : vector<8x1xf32>
      %205 = tpu.reciprocal %204 {approx = true} : vector<8x1xf32> -> vector<8x1xf32>
      %206 = vector.broadcast %189 : vector<1x128xf32> to vector<8x128xf32>
      %207 = arith.mulf %206, %196 : vector<8x128xf32>
      %208 = vector.broadcast %205 : vector<8x1xf32> to vector<8x128xf32>
      %209 = arith.mulf %207, %208 : vector<8x128xf32>
      %210 = vector.broadcast %190 : vector<1x128xf32> to vector<8x128xf32>
      %211 = arith.addf %209, %210 : vector<8x128xf32>
      %c0_80 = arith.constant 0 : index
      %c0_81 = arith.constant 0 : index
      %212 = vector.load %arg17[%c0_80, %c0_81] : memref<8x128xf32, #tpu.memory_space<vmem>>, vector<8x128xf32>
      tpu.vector_store %arg17[%c0_80, %c0_81], %211 {strides = array<i32>} : memref<8x128xf32, #tpu.memory_space<vmem>>, vector<8x128xf32>,
    } else {
    }
    return
  }
  func.func @transform_1(%arg0: i32, %arg1: i32) -> (i32, i32, i32) {
    %c0_i32 = arith.constant 0 : i32
    %c0_i32_0 = arith.constant 0 : i32
    %c0_i32_1 = arith.constant 0 : i32
    return %arg1, %c0_i32, %c0_i32_0 : i32, i32, i32
  }
  func.func @transform_2(%arg0: i32, %arg1: i32) -> (i32, i32, i32) {
    %c0_i32 = arith.constant 0 : i32
    %c0_i32_0 = arith.constant 0 : i32
    %c0_i32_1 = arith.constant 0 : i32
    return %arg1, %c0_i32, %c0_i32_0 : i32, i32, i32
  }
  func.func @transform_3(%arg0: i32, %arg1: i32) -> (i32, i32, i32) {
    %c0_i32 = arith.constant 0 : i32
    %c0_i32_0 = arith.constant 0 : i32
    %c0_i32_1 = arith.constant 0 : i32
    return %arg1, %c0_i32, %c0_i32_0 : i32, i32, i32
  }
  func.func @transform_4(%arg0: i32, %arg1: i32) -> (i32, i32, i32) {
    %c0_i32 = arith.constant 0 : i32
    %c0_i32_0 = arith.constant 0 : i32
    %c0_i32_1 = arith.constant 0 : i32
    return %arg1, %c0_i32, %c0_i32_0 : i32, i32, i32
  }
  func.func @transform_5(%arg0: i32, %arg1: i32) -> (i32, i32, i32) {
    %c0_i32 = arith.constant 0 : i32
    %c0_i32_0 = arith.constant 0 : i32
    %c0_i32_1 = arith.constant 0 : i32
    return %arg1, %c0_i32, %c0_i32_0 : i32, i32, i32
  }
  func.func @transform_6(%arg0: i32, %arg1: i32) -> (i32, i32, i32) {
    %c0_i32 = arith.constant 0 : i32
    %c0_i32_0 = arith.constant 0 : i32
    %c0_i32_1 = arith.constant 0 : i32
    return %arg1, %c0_i32, %c0_i32_0 : i32, i32, i32
  }
  func.func @transform_7(%arg0: i32, %arg1: i32) -> (i32, i32, i32) {
    %c0_i32 = arith.constant 0 : i32
    %c0_i32_0 = arith.constant 0 : i32
    %c0_i32_1 = arith.constant 0 : i32
    return %arg1, %c0_i32, %c0_i32_0 : i32, i32, i32
  }
  func.func @transform_8(%arg0: i32, %arg1: i32) -> (i32, i32, i32) {
    %c0_i32 = arith.constant 0 : i32
    %c0_i32_0 = arith.constant 0 : i32
    %c0_i32_1 = arith.constant 0 : i32
    return %arg1, %c0_i32, %c0_i32_0 : i32, i32, i32
  }
  func.func @transform_9(%arg0: i32, %arg1: i32) -> (i32, i32, i32) {
    %c0_i32 = arith.constant 0 : i32
    %c0_i32_0 = arith.constant 0 : i32
    %c0_i32_1 = arith.constant 0 : i32
    return %arg1, %c0_i32, %c0_i32_0 : i32, i32, i32
  }
  func.func @transform_10(%arg0: i32, %arg1: i32) -> (i32, i32, i32) {
    %c0_i32 = arith.constant 0 : i32
    %c0_i32_0 = arith.constant 0 : i32
    %c0_i32_1 = arith.constant 0 : i32
    return %arg1, %c0_i32, %c0_i32_0 : i32, i32, i32
  }
  func.func @transform_11(%arg0: i32, %arg1: i32) -> (i32, i32, i32) {
    %c0_i32 = arith.constant 0 : i32
    %c0_i32_0 = arith.constant 0 : i32
    %c0_i32_1 = arith.constant 0 : i32
    return %arg1, %c0_i32, %c0_i32_0 : i32, i32, i32
  }
  func.func @transform_12(%arg0: i32, %arg1: i32) -> (i32, i32, i32) {
    %c0_i32 = arith.constant 0 : i32
    %c0_i32_0 = arith.constant 0 : i32
    %c0_i32_1 = arith.constant 0 : i32
    return %arg1, %c0_i32, %c0_i32_0 : i32, i32, i32
  }
  func.func @transform_13(%arg0: i32, %arg1: i32) -> (i32, i32) {
    %c0_i32 = arith.constant 0 : i32
    %c0_i32_0 = arith.constant 0 : i32
    %c0_i32_1 = arith.constant 0 : i32
    return %c0_i32, %c0_i32_0 : i32, i32
  }
  func.func @transform_14(%arg0: i32, %arg1: i32) -> (i32, i32) {
    %c0_i32 = arith.constant 0 : i32
    %c0_i32_0 = arith.constant 0 : i32
    %c0_i32_1 = arith.constant 0 : i32
    return %c0_i32, %c0_i32_0 : i32, i32
  }
  func.func @transform_15(%arg0: i32, %arg1: i32) -> (i32, i32) {
    %c0_i32 = arith.constant 0 : i32
    %c0_i32_0 = arith.constant 0 : i32
    return %arg0, %c0_i32 : i32, i32
  }
}

</mosaic_0001>

<llo_original>
// kernel: tpu_custom_call.1
$region0: #{tpu_custom_call.1}
  #allocation0 [shape = 'u32[]', space=smem, size = 0x4, offset = 0x4, fixed_abs, tag = 'smem constant byte address 0x4 - core index']
  #allocation1 [shape = 'u32[144,128]{1,0:T(1,128)}', space=vmem, size = 0x12000, scoped, tag = 'internal scratch']
  #allocation2 [shape = 's32[1]{0}', space=sflag, size = 0x4, scoped, tag = 'scratch operand']
  #allocation12 [shape = 's32[]', space=sflag, size = 0x4, offset = 0, fixed_abs, tag = 'sflag constant byte address 0x0 - dummy sync flag']
  #allocation13 [shape = 's32[]', space=sflag, size = 0x4, offset = 0, fixed_abs, tag = 'sflag constant byte address 0x0 - dummy sync flag']
  #allocation14 [shape = 'u32[]', space=smem, size = 0x4, offset = 0x44, fixed_abs, tag = 'smem constant byte address 0x44 - assertion arg 0']
  #allocation15 [shape = 'u32[]', space=smem, size = 0x4, offset = 0x48, fixed_abs, tag = 'smem constant byte address 0x48 - assertion arg 1']
  %s0 = inlined_call_operand.hbm [shape: f32[2,8,128], index: 0, kind: input, shape index: {}]
  %s1 = inlined_call_operand.hbm [shape: bf16[2,128,384], index: 1, kind: input, shape index: {}]
  %s2 = inlined_call_operand.vmem [shape: f32[2,1,384], index: 2, kind: input, shape index: {}]
  %s3 = inlined_call_operand.hbm [shape: bf16[2,128,128], index: 3, kind: input, shape index: {}]
  %s4 = inlined_call_operand.vmem [shape: f32[2,1,128], index: 4, kind: input, shape index: {}]
  %s5 = inlined_call_operand.vmem [shape: f32[2,1,128], index: 5, kind: input, shape index: {}]
  %s6 = inlined_call_operand.vmem [shape: f32[2,1,128], index: 6, kind: input, shape index: {}]
  %s7 = inlined_call_operand.hbm [shape: bf16[2,128,256], index: 7, kind: input, shape index: {}]
  %s8 = inlined_call_operand.vmem [shape: f32[2,1,256], index: 8, kind: input, shape index: {}]
  %s9 = inlined_call_operand.hbm [shape: bf16[2,256,128], index: 9, kind: input, shape index: {}]
  %s10 = inlined_call_operand.vmem [shape: f32[2,1,128], index: 10, kind: input, shape index: {}]
  %s11 = inlined_call_operand.vmem [shape: f32[2,1,128], index: 11, kind: input, shape index: {}]
  %s12 = inlined_call_operand.vmem [shape: f32[2,1,128], index: 12, kind: input, shape index: {}]
  %s13 = inlined_call_operand.vmem [shape: f32[1,128], index: 13, kind: input, shape index: {}]
  %s14 = inlined_call_operand.vmem [shape: f32[1,128], index: 14, kind: input, shape index: {}]
  %s15 = inlined_call_operand.hbm [shape: f32[16,128], index: 15, kind: output, shape index: {}]
  %s16 = sld [smem:[#allocation0]]
  $region121: #{tpu_custom_call.1} parent=0
    _
  %s18 = ssub.s32 1, %s16
  %s19 = scalar_select 0, %s18, %s16
  $region1: #{tpu_custom_call.1} parent=0
    #allocation3 [shape = 'u8[196608]{0}', space=vmem, size = 0x30000, scoped, tag = 'input window, operand 1']
    #allocation4 [shape = 's32[2]{0}', space=sflag, size = 0x8, scoped, tag = 'scoped memory for tpu_custom_call.1']
    #allocation5 [shape = 's32[2]{0}', space=sflag, size = 0x8, scoped, tag = 'scoped memory for tpu_custom_call.1']
    #allocation6 [shape = 'u8[65536]{0}', space=vmem, size = 0x10000, scoped, tag = 'input window, operand 3']
    #allocation7 [shape = 's32[2]{0}', space=sflag, size = 0x8, scoped, tag = 'scoped memory for tpu_custom_call.1']
    #allocation8 [shape = 'u8[131072]{0}', space=vmem, size = 0x20000, scoped, tag = 'input window, operand 7']
    #allocation9 [shape = 'u8[131072]{0}', space=vmem, size = 0x20000, scoped, tag = 'input window, operand 9']
    #allocation10 [shape = 's32[2]{0}', space=sflag, size = 0x8, scoped, tag = 'scoped memory for tpu_custom_call.1']
    #allocation11 [shape = 'u8[8192]{0}', space=vmem, size = 0x2000, scoped, tag = 'output window, operand 0']
    %20 = vsyncpa [#allocation4], 0
    %s21 = scalar_lea.sflag [#allocation4], 1
    %22 = vsyncpa %s21, 0
    %23 = vsyncpa [#allocation7], 0
    %s24 = scalar_lea.sflag [#allocation7], 1
    %25 = vsyncpa %s24, 0
    %26 = vsyncpa [#allocation10], 0
    %s27 = scalar_lea.sflag [#allocation10], 1
    %28 = vsyncpa %s27, 0
    %29 = vsyncpa [#allocation5], 0
    %s30 = scalar_lea.sflag [#allocation5], 1
    %31 = vsyncpa %s30, 0
    loop: start=0, step=1, limit=6
    $region2: #{tpu_custom_call.1} parent=1 // loop_pre_header
      _
    $region3: #{tpu_custom_call.1} parent=1 // loop_header
      %s33 = sphi 0, %s37
      %p34 = scmp.ge.s32.totalorder %s33, 6
      %s40 = sphi 0, %s52
      %s41 = sphi 0, %s48
      %s42 = sphi 0, %s40
      %s43 = sphi 0, %s41
      %s44 = sphi 0, %s42
      %s45 = sphi 0, %s43
      %s55 = sphi 0, %s57
      %s58 = sphi 0, %s55
      %s59 = sphi 0, %s58
      %s75 = sphi 0, %s59
      %s81 = sphi 0, %s83
      %s84 = sphi 0, %s81
      %s85 = sphi 0, %s84
      %s101 = sphi 0, %s85
      %s107 = sphi 0, %s109
      %s110 = sphi 0, %s107
      %s111 = sphi 0, %s110
      %s127 = sphi 0, %s111
      %s133 = sphi 0, %s135
      %s136 = sphi 0, %s133
      %s137 = sphi 0, %s136
      %s153 = sphi 0, %s137
      %s159 = sphi 0, %s161
      %s162 = sphi 0, %s159
      %s163 = sphi 0, %s162
      %s179 = sphi 0, %s163
      %s185 = sphi 0, %s187
      %s188 = sphi 0, %s185
      %s189 = sphi 0, %s188
      %s205 = sphi 0, %s189
      %s211 = sphi 0, %s213
      %s214 = sphi 0, %s211
      %s215 = sphi 0, %s214
      %s231 = sphi 0, %s215
      %s237 = sphi 0, %s239
      %s240 = sphi 0, %s237
      %s241 = sphi 0, %s240
      %s257 = sphi 0, %s241
      %s263 = sphi 0, %s265
      %s266 = sphi 0, %s263
      %s267 = sphi 0, %s266
      %s283 = sphi 0, %s267
      %s289 = sphi 0, %s291
      %s292 = sphi 0, %s289
      %s293 = sphi 0, %s292
      %s309 = sphi 0, %s293
      %s315 = sphi 0, %s317
      %s318 = sphi 0, %s315
      %s319 = sphi 0, %s318
      %s335 = sphi 0, %s319
      %s341 = sphi 0, %s343
      %s344 = sphi 0, %s341
      %s345 = sphi 0, %s344
      %s361 = sphi 0, %s345
      %s365 = sphi 0, %s365
      %s367 = sphi 0, %s365
      %s368 = sphi 0, %s367
      %s382 = sphi 0, %s368
      %s386 = sphi 0, %s386
      %s388 = sphi 0, %s386
      %s389 = sphi 0, %s388
      %s403 = sphi 0, %s389
      %s409 = sphi 0, %s411
      %s412 = sphi 0, %s409
      %s413 = sphi 0, %s412
      %s429 = sphi 0, %s413
    $region4: #{tpu_custom_call.1} parent=1 // loop_header_branch
      %36 = sbr.rel (%p34) target = $region8
    $region5: #{tpu_custom_call.1} parent=1 // loop_body
      %s38 = ssub.s32 %s33, 1
      %s39 = ssub.s32 %s33, 2
      %s46 = sadd.s32 1, %s41
      %p47 = scmp.ge.s32.totalorder %s46, 2
      %s48 = scalar_select %p47, 0, %s46
      %s49 = sadd.s32 1, %s40
      %s50 = scalar_select %p47, %s49, %s40
      %p51 = scmp.ge.s32.totalorder %s50, 2
      %s52 = scalar_select %p51, 0, %s50
      %s53 = ssub.s32 %s41, %s48
      %p54 = scmp.eq.s32.totalorder %s53, 0
      %s56 = sadd.s32 %s55, 1
      %s57 = scalar_select %p54, %s55, %s56
      %p60 = pneg %p54
      %p61 = scmp.eq.s32.totalorder %s33, 3
      %p62 = por %p60, %p61
      %p63 = scmp.ne.s32.totalorder %s55, %s58
      %p64 = scmp.eq.s32.totalorder %s33, 0
      %p65 = por %p63, %p64
      %p66 = scmp.ne.s32.totalorder %s55, %s58
      %p67 = scmp.eq.s32.totalorder %s38, 3
      %p68 = por %p66, %p67
      %p69 = scmp.ne.s32.totalorder %s58, %s59
      %p70 = scmp.eq.s32.totalorder %s38, 0
      %p71 = por %p69, %p70
      %p72 = scmp.ne.s32.totalorder %s58, %s59
      %p73 = scmp.eq.s32.totalorder %s39, 3
      %p74 = por %p72, %p73
      %p76 = scmp.ne.s32.totalorder %s59, %s75
      %p77 = scmp.eq.s32.totalorder %s39, 0
      %p78 = por %p76, %p77
      %s79 = ssub.s32 %s41, %s48
      %p80 = scmp.eq.s32.totalorder %s79, 0
      %s82 = sadd.s32 %s81, 1
      %s83 = scalar_select %p80, %s81, %s82
      %p86 = pneg %p80
      %p87 = scmp.eq.s32.totalorder %s33, 3
      %p88 = por %p86, %p87
      %p89 = scmp.ne.s32.totalorder %s81, %s84
      %p90 = scmp.eq.s32.totalorder %s33, 0
      %p91 = por %p89, %p90
      %p92 = scmp.ne.s32.totalorder %s81, %s84
      %p93 = scmp.eq.s32.totalorder %s38, 3
      %p94 = por %p92, %p93
      %p95 = scmp.ne.s32.totalorder %s84, %s85
      %p96 = scmp.eq.s32.totalorder %s38, 0
      %p97 = por %p95, %p96
      %p98 = scmp.ne.s32.totalorder %s84, %s85
      %p99 = scmp.eq.s32.totalorder %s39, 3
      %p100 = por %p98, %p99
      %p102 = scmp.ne.s32.totalorder %s85, %s101
      %p103 = scmp.eq.s32.totalorder %s39, 0
      %p104 = por %p102, %p103
      %s105 = ssub.s32 %s41, %s48
      %p106 = scmp.eq.s32.totalorder %s105, 0
      %s108 = sadd.s32 %s107, 1
      %s109 = scalar_select %p106, %s107, %s108
      %p112 = pneg %p106
      %p113 = scmp.eq.s32.totalorder %s33, 3
      %p114 = por %p112, %p113
      %p115 = scmp.ne.s32.totalorder %s107, %s110
      %p116 = scmp.eq.s32.totalorder %s33, 0
      %p117 = por %p115, %p116
      %p118 = scmp.ne.s32.totalorder %s107, %s110
      %p119 = scmp.eq.s32.totalorder %s38, 3
      %p120 = por %p118, %p119
      %p121 = scmp.ne.s32.totalorder %s110, %s111
      %p122 = scmp.eq.s32.totalorder %s38, 0
      %p123 = por %p121, %p122
      %p124 = scmp.ne.s32.totalorder %s110, %s111
      %p125 = scmp.eq.s32.totalorder %s39, 3
      %p126 = por %p124, %p125
      %p128 = scmp.ne.s32.totalorder %s111, %s127
      %p129 = scmp.eq.s32.totalorder %s39, 0
      %p130 = por %p128, %p129
      %s131 = ssub.s32 %s41, %s48
      %p132 = scmp.eq.s32.totalorder %s131, 0
      %s134 = sadd.s32 %s133, 1
      %s135 = scalar_select %p132, %s133, %s134
      %p138 = pneg %p132
      %p139 = scmp.eq.s32.totalorder %s33, 3
      %p140 = por %p138, %p139
      %p141 = scmp.ne.s32.totalorder %s133, %s136
      %p142 = scmp.eq.s32.totalorder %s33, 0
      %p143 = por %p141, %p142
      %p144 = scmp.ne.s32.totalorder %s133, %s136
      %p145 = scmp.eq.s32.totalorder %s38, 3
      %p146 = por %p144, %p145
      %p147 = scmp.ne.s32.totalorder %s136, %s137
      %p148 = scmp.eq.s32.totalorder %s38, 0
      %p149 = por %p147, %p148
      %p150 = scmp.ne.s32.totalorder %s136, %s137
      %p151 = scmp.eq.s32.totalorder %s39, 3
      %p152 = por %p150, %p151
      %p154 = scmp.ne.s32.totalorder %s137, %s153
      %p155 = scmp.eq.s32.totalorder %s39, 0
      %p156 = por %p154, %p155
      %s157 = ssub.s32 %s41, %s48
      %p158 = scmp.eq.s32.totalorder %s157, 0
      %s160 = sadd.s32 %s159, 1
      %s161 = scalar_select %p158, %s159, %s160
      %p164 = pneg %p158
      %p165 = scmp.eq.s32.totalorder %s33, 3
      %p166 = por %p164, %p165
      %p167 = scmp.ne.s32.totalorder %s159, %s162
      %p168 = scmp.eq.s32.totalorder %s33, 0
      %p169 = por %p167, %p168
      %p170 = scmp.ne.s32.totalorder %s159, %s162
      %p171 = scmp.eq.s32.totalorder %s38, 3
      %p172 = por %p170, %p171
      %p173 = scmp.ne.s32.totalorder %s162, %s163
      %p174 = scmp.eq.s32.totalorder %s38, 0
      %p175 = por %p173, %p174
      %p176 = scmp.ne.s32.totalorder %s162, %s163
      %p177 = scmp.eq.s32.totalorder %s39, 3
      %p178 = por %p176, %p177
      %p180 = scmp.ne.s32.totalorder %s163, %s179
      %p181 = scmp.eq.s32.totalorder %s39, 0
      %p182 = por %p180, %p181
      %s183 = ssub.s32 %s41, %s48
      %p184 = scmp.eq.s32.totalorder %s183, 0
      %s186 = sadd.s32 %s185, 1
      %s187 = scalar_select %p184, %s185, %s186
      %p190 = pneg %p184
      %p191 = scmp.eq.s32.totalorder %s33, 3
      %p192 = por %p190, %p191
      %p193 = scmp.ne.s32.totalorder %s185, %s188
      %p194 = scmp.eq.s32.totalorder %s33, 0
      %p195 = por %p193, %p194
      %p196 = scmp.ne.s32.totalorder %s185, %s188
      %p197 = scmp.eq.s32.totalorder %s38, 3
      %p198 = por %p196, %p197
      %p199 = scmp.ne.s32.totalorder %s188, %s189
      %p200 = scmp.eq.s32.totalorder %s38, 0
      %p201 = por %p199, %p200
      %p202 = scmp.ne.s32.totalorder %s188, %s189
      %p203 = scmp.eq.s32.totalorder %s39, 3
      %p204 = por %p202, %p203
      %p206 = scmp.ne.s32.totalorder %s189, %s205
      %p207 = scmp.eq.s32.totalorder %s39, 0
      %p208 = por %p206, %p207
      %s209 = ssub.s32 %s41, %s48
      %p210 = scmp.eq.s32.totalorder %s209, 0
      %s212 = sadd.s32 %s211, 1
      %s213 = scalar_select %p210, %s211, %s212
      %p216 = pneg %p210
      %p217 = scmp.eq.s32.totalorder %s33, 3
      %p218 = por %p216, %p217
      %p219 = scmp.ne.s32.totalorder %s211, %s214
      %p220 = scmp.eq.s32.totalorder %s33, 0
      %p221 = por %p219, %p220
      %p222 = scmp.ne.s32.totalorder %s211, %s214
      %p223 = scmp.eq.s32.totalorder %s38, 3
      %p224 = por %p222, %p223
      %p225 = scmp.ne.s32.totalorder %s214, %s215
      %p226 = scmp.eq.s32.totalorder %s38, 0
      %p227 = por %p225, %p226
      %p228 = scmp.ne.s32.totalorder %s214, %s215
      %p229 = scmp.eq.s32.totalorder %s39, 3
      %p230 = por %p228, %p229
      %p232 = scmp.ne.s32.totalorder %s215, %s231
      %p233 = scmp.eq.s32.totalorder %s39, 0
      %p234 = por %p232, %p233
      %s235 = ssub.s32 %s41, %s48
      %p236 = scmp.eq.s32.totalorder %s235, 0
      %s238 = sadd.s32 %s237, 1
      %s239 = scalar_select %p236, %s237, %s238
      %p242 = pneg %p236
      %p243 = scmp.eq.s32.totalorder %s33, 3
      %p244 = por %p242, %p243
      %p245 = scmp.ne.s32.totalorder %s237, %s240
      %p246 = scmp.eq.s32.totalorder %s33, 0
      %p247 = por %p245, %p246
      %p248 = scmp.ne.s32.totalorder %s237, %s240
      %p249 = scmp.eq.s32.totalorder %s38, 3
      %p250 = por %p248, %p249
      %p251 = scmp.ne.s32.totalorder %s240, %s241
      %p252 = scmp.eq.s32.totalorder %s38, 0
      %p253 = por %p251, %p252
      %p254 = scmp.ne.s32.totalorder %s240, %s241
      %p255 = scmp.eq.s32.totalorder %s39, 3
      %p256 = por %p254, %p255
      %p258 = scmp.ne.s32.totalorder %s241, %s257
      %p259 = scmp.eq.s32.totalorder %s39, 0
      %p260 = por %p258, %p259
      %s261 = ssub.s32 %s41, %s48
      %p262 = scmp.eq.s32.totalorder %s261, 0
      %s264 = sadd.s32 %s263, 1
      %s265 = scalar_select %p262, %s263, %s264
      %p268 = pneg %p262
      %p269 = scmp.eq.s32.totalorder %s33, 3
      %p270 = por %p268, %p269
      %p271 = scmp.ne.s32.totalorder %s263, %s266
      %p272 = scmp.eq.s32.totalorder %s33, 0
      %p273 = por %p271, %p272
      %p274 = scmp.ne.s32.totalorder %s263, %s266
      %p275 = scmp.eq.s32.totalorder %s38, 3
      %p276 = por %p274, %p275
      %p277 = scmp.ne.s32.totalorder %s266, %s267
      %p278 = scmp.eq.s32.totalorder %s38, 0
      %p279 = por %p277, %p278
      %p280 = scmp.ne.s32.totalorder %s266, %s267
      %p281 = scmp.eq.s32.totalorder %s39, 3
      %p282 = por %p280, %p281
      %p284 = scmp.ne.s32.totalorder %s267, %s283
      %p285 = scmp.eq.s32.totalorder %s39, 0
      %p286 = por %p284, %p285
      %s287 = ssub.s32 %s41, %s48
      %p288 = scmp.eq.s32.totalorder %s287, 0
      %s290 = sadd.s32 %s289, 1
      %s291 = scalar_select %p288, %s289, %s290
      %p294 = pneg %p288
      %p295 = scmp.eq.s32.totalorder %s33, 3
      %p296 = por %p294, %p295
      %p297 = scmp.ne.s32.totalorder %s289, %s292
      %p298 = scmp.eq.s32.totalorder %s33, 0
      %p299 = por %p297, %p298
      %p300 = scmp.ne.s32.totalorder %s289, %s292
      %p301 = scmp.eq.s32.totalorder %s38, 3
      %p302 = por %p300, %p301
      %p303 = scmp.ne.s32.totalorder %s292, %s293
      %p304 = scmp.eq.s32.totalorder %s38, 0
      %p305 = por %p303, %p304
      %p306 = scmp.ne.s32.totalorder %s292, %s293
      %p307 = scmp.eq.s32.totalorder %s39, 3
      %p308 = por %p306, %p307
      %p310 = scmp.ne.s32.totalorder %s293, %s309
      %p311 = scmp.eq.s32.totalorder %s39, 0
      %p312 = por %p310, %p311
      %s313 = ssub.s32 %s41, %s48
      %p314 = scmp.eq.s32.totalorder %s313, 0
      %s316 = sadd.s32 %s315, 1
      %s317 = scalar_select %p314, %s315, %s316
      %p320 = pneg %p314
      %p321 = scmp.eq.s32.totalorder %s33, 3
      %p322 = por %p320, %p321
      %p323 = scmp.ne.s32.totalorder %s315, %s318
      %p324 = scmp.eq.s32.totalorder %s33, 0
      %p325 = por %p323, %p324
      %p326 = scmp.ne.s32.totalorder %s315, %s318
      %p327 = scmp.eq.s32.totalorder %s38, 3
      %p328 = por %p326, %p327
      %p329 = scmp.ne.s32.totalorder %s318, %s319
      %p330 = scmp.eq.s32.totalorder %s38, 0
      %p331 = por %p329, %p330
      %p332 = scmp.ne.s32.totalorder %s318, %s319
      %p333 = scmp.eq.s32.totalorder %s39, 3
      %p334 = por %p332, %p333
      %p336 = scmp.ne.s32.totalorder %s319, %s335
      %p337 = scmp.eq.s32.totalorder %s39, 0
      %p338 = por %p336, %p337
      %s339 = ssub.s32 %s41, %s48
      %p340 = scmp.eq.s32.totalorder %s339, 0
      %s342 = sadd.s32 %s341, 1
      %s343 = scalar_select %p340, %s341, %s342
      %p346 = pneg %p340
      %p347 = scmp.eq.s32.totalorder %s33, 3
      %p348 = por %p346, %p347
      %p349 = scmp.ne.s32.totalorder %s341, %s344
      %p350 = scmp.eq.s32.totalorder %s33, 0
      %p351 = por %p349, %p350
      %p352 = scmp.ne.s32.totalorder %s341, %s344
      %p353 = scmp.eq.s32.totalorder %s38, 3
      %p354 = por %p352, %p353
      %p355 = scmp.ne.s32.totalorder %s344, %s345
      %p356 = scmp.eq.s32.totalorder %s38, 0
      %p357 = por %p355, %p356
      %p358 = scmp.ne.s32.totalorder %s344, %s345
      %p359 = scmp.eq.s32.totalorder %s39, 3
      %p360 = por %p358, %p359
      %p362 = scmp.ne.s32.totalorder %s345, %s361
      %p363 = scmp.eq.s32.totalorder %s39, 0
      %p364 = por %p362, %p363
      %s366 = sadd.s32 %s365, 1
      %p369 = scmp.eq.s32.totalorder %s33, 3
      %p370 = scmp.ne.s32.totalorder %s365, %s367
      %p371 = scmp.eq.s32.totalorder %s33, 0
      %p372 = por %p370, %p371
      %p373 = scmp.ne.s32.totalorder %s365, %s367
      %p374 = scmp.eq.s32.totalorder %s38, 3
      %p375 = por %p373, %p374
      %p376 = scmp.ne.s32.totalorder %s367, %s368
      %p377 = scmp.eq.s32.totalorder %s38, 0
      %p378 = por %p376, %p377
      %p379 = scmp.ne.s32.totalorder %s367, %s368
      %p380 = scmp.eq.s32.totalorder %s39, 3
      %p381 = por %p379, %p380
      %p383 = scmp.ne.s32.totalorder %s368, %s382
      %p384 = scmp.eq.s32.totalorder %s39, 0
      %p385 = por %p383, %p384
      %s387 = sadd.s32 %s386, 1
      %p390 = scmp.eq.s32.totalorder %s33, 3
      %p391 = scmp.ne.s32.totalorder %s386, %s388
      %p392 = scmp.eq.s32.totalorder %s33, 0
      %p393 = por %p391, %p392
      %p394 = scmp.ne.s32.totalorder %s386, %s388
      %p395 = scmp.eq.s32.totalorder %s38, 3
      %p396 = por %p394, %p395
      %p397 = scmp.ne.s32.totalorder %s388, %s389
      %p398 = scmp.eq.s32.totalorder %s38, 0
      %p399 = por %p397, %p398
      %p400 = scmp.ne.s32.totalorder %s388, %s389
      %p401 = scmp.eq.s32.totalorder %s39, 3
      %p402 = por %p400, %p401
      %p404 = scmp.ne.s32.totalorder %s389, %s403
      %p405 = scmp.eq.s32.totalorder %s39, 0
      %p406 = por %p404, %p405
      %s407 = ssub.s32 %s40, %s52
      %p408 = scmp.eq.s32.totalorder %s407, 0
      %s410 = sadd.s32 %s409, 1
      %s411 = scalar_select %p408, %s409, %s410
      %p414 = pneg %p408
      %p415 = scmp.eq.s32.totalorder %s33, 3
      %p416 = por %p414, %p415
      %p417 = scmp.ne.s32.totalorder %s409, %s412
      %p418 = scmp.eq.s32.totalorder %s33, 0
      %p419 = por %p417, %p418
      %p420 = scmp.ne.s32.totalorder %s409, %s412
      %p421 = scmp.eq.s32.totalorder %s38, 3
      %p422 = por %p420, %p421
      %p423 = scmp.ne.s32.totalorder %s412, %s413
      %p424 = scmp.eq.s32.totalorder %s38, 0
      %p425 = por %p423, %p424
      %p426 = scmp.ne.s32.totalorder %s412, %s413
      %p427 = scmp.eq.s32.totalorder %s39, 3
      %p428 = por %p426, %p427
      %p430 = scmp.ne.s32.totalorder %s413, %s429
      %p431 = scmp.eq.s32.totalorder %s39, 0
      %p432 = por %p430, %p431
      %p433 = scmp.le.s32.totalorder 1, %s33
      %p434 = scmp.lt.s32.totalorder %s33, 5
      %p435 = pnand %p433, %p434
      %p436 = pneg %p435
      // Predicated region
      $region9: #{tpu_custom_call.1} parent=5 // pred_check
        _
      $region10: #{tpu_custom_call.1} parent=5 // pred_check_branch
        %438 = sbr.rel (%p435) target = $region12
      $region11: #{tpu_custom_call.1} parent=5 // pred_region
        %s439 = ssub.s32 %s33, 1
        // Predicated region
        $region13: #{tpu_custom_call.1} parent=11 // pred_check
          %p440 = pneg %p378
        $region14: #{tpu_custom_call.1} parent=11 // pred_check_branch
          %442 = sbr.rel (%p440) target = $region16
        $region15: #{tpu_custom_call.1} parent=11 // pred_region
          _
        $region16: #{tpu_custom_call.1} parent=11 // pred_fallthru
          _
        // Predicated region
        $region17: #{tpu_custom_call.1} parent=11 // pred_check
          %p443 = pneg %p399
        $region18: #{tpu_custom_call.1} parent=11 // pred_check_branch
          %445 = sbr.rel (%p443) target = $region20
        $region19: #{tpu_custom_call.1} parent=11 // pred_region
          _
        $region20: #{tpu_custom_call.1} parent=11 // pred_fallthru
          _
      $region12: #{tpu_custom_call.1} parent=5 // pred_fallthru
        _
      %p446 = scmp.lt.s32.totalorder %s33, 4
      // Predicated region
      $region21: #{tpu_custom_call.1} parent=5 // pred_check
        %p447 = pneg %p446
      $region22: #{tpu_custom_call.1} parent=5 // pred_check_branch
        %449 = sbr.rel (%p447) target = $region24
      $region23: #{tpu_custom_call.1} parent=5 // pred_region
        // Predicated region
        $region25: #{tpu_custom_call.1} parent=23 // pred_check
          %p450 = pneg %p65
        $region26: #{tpu_custom_call.1} parent=23 // pred_check_branch
          %452 = sbr.rel (%p450) target = $region28
        $region27: #{tpu_custom_call.1} parent=23 // pred_region
          %s453 = sand.u32 %s55, 1
          %s454 = scalar_lea.sflag [#allocation4], %s453
          %s455 = sand.u32 %s55, 1
          %s456 = smul.addr %s455, 192
          %s457 = scalar_lea.vmem [#allocation3], %s456
          %s459 = ssub.s32 3072, 3072
          %460 = vsyncadd %s454, %s459
          %s461 = smul.addr %s41, 48
          %s462 = smul.addr %s461, 64
          %s463 = scalar_lea.hbm %s1, %s462
          %s464 = sshll.u32 %s457, 4
          %s465 = int_to_ptr.vmem [resolvable:$true] %s464
          %470 = dma.hbm_to_vmem [thread:$0]  %s463, 3072, %s465, %s454, 192, 192, 12
        $region28: #{tpu_custom_call.1} parent=23 // pred_fallthru
          _
        // Predicated region
        $region29: #{tpu_custom_call.1} parent=23 // pred_check
          %p471 = pneg %p91
        $region30: #{tpu_custom_call.1} parent=23 // pred_check_branch
          %473 = sbr.rel (%p471) target = $region32
        $region31: #{tpu_custom_call.1} parent=23 // pred_region
          %p474 = scmp.lt.s32.totalorder %s41, 1
          %s475 = scalar_select %p474, %s41, 1
          %s476 = smul.addr %s475, 3
          %s477 = scalar_lea.vmem %s2, %s476
        $region32: #{tpu_custom_call.1} parent=23 // pred_fallthru
          _
        // Predicated region
        $region33: #{tpu_custom_call.1} parent=23 // pred_check
          %p478 = pneg %p117
        $region34: #{tpu_custom_call.1} parent=23 // pred_check_branch
          %480 = sbr.rel (%p478) target = $region36
        $region35: #{tpu_custom_call.1} parent=23 // pred_region
          %s481 = sand.u32 %s33, 1
          %s482 = scalar_lea.sflag [#allocation7], %s481
          %s483 = sand.u32 %s107, 1
          %s484 = smul.addr %s483, 64
          %s485 = scalar_lea.vmem [#allocation6], %s484
          %s487 = ssub.s32 1024, 1024
          %488 = vsyncadd %s482, %s487
          %s489 = smul.addr %s41, 16
          %s490 = smul.addr %s489, 64
          %s491 = scalar_lea.hbm %s3, %s490
          %s492 = sshll.u32 %s485, 4
          %s493 = int_to_ptr.vmem [resolvable:$true] %s492
          %498 = dma.hbm_to_vmem [thread:$0]  %s491, 1024, %s493, %s482, 64, 64, 4
        $region36: #{tpu_custom_call.1} parent=23 // pred_fallthru
          _
        // Predicated region
        $region37: #{tpu_custom_call.1} parent=23 // pred_check
          %p499 = pneg %p143
        $region38: #{tpu_custom_call.1} parent=23 // pred_check_branch
          %501 = sbr.rel (%p499) target = $region40
        $region39: #{tpu_custom_call.1} parent=23 // pred_region
          %p502 = scmp.lt.s32.totalorder %s41, 1
          %s503 = scalar_select %p502, %s41, 1
          %s504 = scalar_lea.vmem %s4, %s503
        $region40: #{tpu_custom_call.1} parent=23 // pred_fallthru
          _
        // Predicated region
        $region41: #{tpu_custom_call.1} parent=23 // pred_check
          %p505 = pneg %p169
        $region42: #{tpu_custom_call.1} parent=23 // pred_check_branch
          %507 = sbr.rel (%p505) target = $region44
        $region43: #{tpu_custom_call.1} parent=23 // pred_region
          %p508 = scmp.lt.s32.totalorder %s41, 1
          %s509 = scalar_select %p508, %s41, 1
          %s510 = scalar_lea.vmem %s5, %s509
        $region44: #{tpu_custom_call.1} parent=23 // pred_fallthru
          _
        // Predicated region
        $region45: #{tpu_custom_call.1} parent=23 // pred_check
          %p511 = pneg %p195
        $region46: #{tpu_custom_call.1} parent=23 // pred_check_branch
          %513 = sbr.rel (%p511) target = $region48
        $region47: #{tpu_custom_call.1} parent=23 // pred_region
          %p514 = scmp.lt.s32.totalorder %s41, 1
          %s515 = scalar_select %p514, %s41, 1
          %s516 = scalar_lea.vmem %s6, %s515
        $region48: #{tpu_custom_call.1} parent=23 // pred_fallthru
          _
        // Predicated region
        $region49: #{tpu_custom_call.1} parent=23 // pred_check
          %p517 = pneg %p221
        $region50: #{tpu_custom_call.1} parent=23 // pred_check_branch
          %519 = sbr.rel (%p517) target = $region52
        $region51: #{tpu_custom_call.1} parent=23 // pred_region
          %s520 = sand.u32 %s33, 1
          %s521 = scalar_lea.sflag [#allocation7], %s520
          %s522 = sand.u32 %s211, 1
          %s523 = smul.addr %s522, 128
          %s524 = scalar_lea.vmem [#allocation8], %s523
          %s526 = ssub.s32 2048, 2048
          %527 = vsyncadd %s521, %s526
          %s528 = smul.addr %s41, 32
          %s529 = smul.addr %s528, 64
          %s530 = scalar_lea.hbm %s7, %s529
          %s531 = sshll.u32 %s524, 4
          %s532 = int_to_ptr.vmem [resolvable:$true] %s531
          %537 = dma.hbm_to_vmem [thread:$0]  %s530, 2048, %s532, %s521, 128, 128, 8
        $region52: #{tpu_custom_call.1} parent=23 // pred_fallthru
          _
        // Predicated region
        $region53: #{tpu_custom_call.1} parent=23 // pred_check
          %p538 = pneg %p247
        $region54: #{tpu_custom_call.1} parent=23 // pred_check_branch
          %540 = sbr.rel (%p538) target = $region56
        $region55: #{tpu_custom_call.1} parent=23 // pred_region
          %p541 = scmp.lt.s32.totalorder %s41, 1
          %s542 = scalar_select %p541, %s41, 1
          %s543 = smul.addr %s542, 2
          %s544 = scalar_lea.vmem %s8, %s543
        $region56: #{tpu_custom_call.1} parent=23 // pred_fallthru
          _
        // Predicated region
        $region57: #{tpu_custom_call.1} parent=23 // pred_check
          %p545 = pneg %p273
        $region58: #{tpu_custom_call.1} parent=23 // pred_check_branch
          %547 = sbr.rel (%p545) target = $region60
        $region59: #{tpu_custom_call.1} parent=23 // pred_region
          %s548 = sand.u32 %s263, 1
          %s549 = scalar_lea.sflag [#allocation10], %s548
          %s550 = sand.u32 %s263, 1
          %s551 = smul.addr %s550, 128
          %s552 = scalar_lea.vmem [#allocation9], %s551
          %s554 = ssub.s32 2048, 2048
          %555 = vsyncadd %s549, %s554
          %s556 = smul.addr %s41, 32
          %s557 = smul.addr %s556, 64
          %s558 = scalar_lea.hbm %s9, %s557
          %s559 = sshll.u32 %s552, 4
          %s560 = int_to_ptr.vmem [resolvable:$true] %s559
          %565 = dma.hbm_to_vmem [thread:$0]  %s558, 2048, %s560, %s549, 64, 64, 4
        $region60: #{tpu_custom_call.1} parent=23 // pred_fallthru
          _
        // Predicated region
        $region61: #{tpu_custom_call.1} parent=23 // pred_check
          %p566 = pneg %p299
        $region62: #{tpu_custom_call.1} parent=23 // pred_check_branch
          %568 = sbr.rel (%p566) target = $region64
        $region63: #{tpu_custom_call.1} parent=23 // pred_region
          %p569 = scmp.lt.s32.totalorder %s41, 1
          %s570 = scalar_select %p569, %s41, 1
          %s571 = scalar_lea.vmem %s10, %s570
        $region64: #{tpu_custom_call.1} parent=23 // pred_fallthru
          _
        // Predicated region
        $region65: #{tpu_custom_call.1} parent=23 // pred_check
          %p572 = pneg %p325
        $region66: #{tpu_custom_call.1} parent=23 // pred_check_branch
          %574 = sbr.rel (%p572) target = $region68
        $region67: #{tpu_custom_call.1} parent=23 // pred_region
          %p575 = scmp.lt.s32.totalorder %s41, 1
          %s576 = scalar_select %p575, %s41, 1
          %s577 = scalar_lea.vmem %s11, %s576
        $region68: #{tpu_custom_call.1} parent=23 // pred_fallthru
          _
        // Predicated region
        $region69: #{tpu_custom_call.1} parent=23 // pred_check
          %p578 = pneg %p351
        $region70: #{tpu_custom_call.1} parent=23 // pred_check_branch
          %580 = sbr.rel (%p578) target = $region72
        $region71: #{tpu_custom_call.1} parent=23 // pred_region
          %p581 = scmp.lt.s32.totalorder %s41, 1
          %s582 = scalar_select %p581, %s41, 1
          %s583 = scalar_lea.vmem %s12, %s582
        $region72: #{tpu_custom_call.1} parent=23 // pred_fallthru
          _
      $region24: #{tpu_custom_call.1} parent=5 // pred_fallthru
        _
      %p584 = scmp.le.s32.totalorder 1, %s33
      %p585 = scmp.lt.s32.totalorder %s33, 5
      %p586 = pnand %p584, %p585
      %p587 = pneg %p586
      // Predicated region
      $region73: #{tpu_custom_call.1} parent=5 // pred_check
        _
      $region74: #{tpu_custom_call.1} parent=5 // pred_check_branch
        %589 = sbr.rel (%p586) target = $region76
      $region75: #{tpu_custom_call.1} parent=5 // pred_region
        %s590 = ssub.s32 %s33, 1
        %s591 = sand.u32 %s58, 1
        %s592 = scalar_lea.sflag [#allocation4], %s591
        %s593 = sand.u32 %s58, 1
        %s594 = smul.addr %s593, 192
        %s595 = scalar_lea.vmem [#allocation3], %s594
        // Predicated region
        $region77: #{tpu_custom_call.1} parent=75 // pred_check
          %p596 = pneg %p71
        $region78: #{tpu_custom_call.1} parent=75 // pred_check_branch
          %598 = sbr.rel (%p596) target = $region80
        $region79: #{tpu_custom_call.1} parent=75 // pred_region
          %599 = dma.done %s592, 3072
        $region80: #{tpu_custom_call.1} parent=75 // pred_fallthru
          _
        %s600 = sand.u32 %s38, 1
        %s601 = scalar_lea.sflag [#allocation7], %s600
        %s602 = sand.u32 %s110, 1
        %s603 = smul.addr %s602, 64
        %s604 = scalar_lea.vmem [#allocation6], %s603
        // Predicated region
        $region81: #{tpu_custom_call.1} parent=75 // pred_check
          %p605 = pneg %p123
        $region82: #{tpu_custom_call.1} parent=75 // pred_check_branch
          %607 = sbr.rel (%p605) target = $region84
        $region83: #{tpu_custom_call.1} parent=75 // pred_region
          %608 = dma.done %s601, 1024
        $region84: #{tpu_custom_call.1} parent=75 // pred_fallthru
          _
        %s609 = sand.u32 %s38, 1
        %s610 = scalar_lea.sflag [#allocation7], %s609
        %s611 = sand.u32 %s214, 1
        %s612 = smul.addr %s611, 128
        %s613 = scalar_lea.vmem [#allocation8], %s612
        // Predicated region
        $region85: #{tpu_custom_call.1} parent=75 // pred_check
          %p614 = pneg %p227
        $region86: #{tpu_custom_call.1} parent=75 // pred_check_branch
          %616 = sbr.rel (%p614) target = $region88
        $region87: #{tpu_custom_call.1} parent=75 // pred_region
          %617 = dma.done %s610, 2048
        $region88: #{tpu_custom_call.1} parent=75 // pred_fallthru
          _
        %s618 = sand.u32 %s266, 1
        %s619 = scalar_lea.sflag [#allocation10], %s618
        %s620 = sand.u32 %s266, 1
        %s621 = smul.addr %s620, 128
        %s622 = scalar_lea.vmem [#allocation9], %s621
        // Predicated region
        $region89: #{tpu_custom_call.1} parent=75 // pred_check
          %p623 = pneg %p279
        $region90: #{tpu_custom_call.1} parent=75 // pred_check_branch
          %625 = sbr.rel (%p623) target = $region92
        $region91: #{tpu_custom_call.1} parent=75 // pred_region
          %626 = dma.done %s619, 2048
        $region92: #{tpu_custom_call.1} parent=75 // pred_fallthru
          _
        %s627 = sand.u32 %s58, 1
        %s628 = scalar_lea.sflag [#allocation4], %s627
        %s629 = sand.u32 %s58, 1
        %s630 = smul.addr %s629, 192
        %s631 = scalar_lea.vmem [#allocation3], %s630
        %p632 = pneg %p71
        %p633 = pneg %p68
        %p634 = scmp.lt.s32.totalorder %s43, 1
        %s635 = scalar_select %p634, %s43, 1
        %s636 = smul.addr %s635, 3
        %s637 = scalar_lea.vmem %s2, %s636
        %p638 = pneg %p97
        %p639 = pneg %p94
        %s640 = sand.u32 %s38, 1
        %s641 = scalar_lea.sflag [#allocation7], %s640
        %s642 = sand.u32 %s110, 1
        %s643 = smul.addr %s642, 64
        %s644 = scalar_lea.vmem [#allocation6], %s643
        %p645 = pneg %p123
        %p646 = pneg %p120
        %p647 = scmp.lt.s32.totalorder %s43, 1
        %s648 = scalar_select %p647, %s43, 1
        %s649 = scalar_lea.vmem %s4, %s648
        %p650 = pneg %p149
        %p651 = pneg %p146
        %p652 = scmp.lt.s32.totalorder %s43, 1
        %s653 = scalar_select %p652, %s43, 1
        %s654 = scalar_lea.vmem %s5, %s653
        %p655 = pneg %p175
        %p656 = pneg %p172
        %p657 = scmp.lt.s32.totalorder %s43, 1
        %s658 = scalar_select %p657, %s43, 1
        %s659 = scalar_lea.vmem %s6, %s658
        %p660 = pneg %p201
        %p661 = pneg %p198
        %s662 = sand.u32 %s38, 1
        %s663 = scalar_lea.sflag [#allocation7], %s662
        %s664 = sand.u32 %s214, 1
        %s665 = smul.addr %s664, 128
        %s666 = scalar_lea.vmem [#allocation8], %s665
        %p667 = pneg %p227
        %p668 = pneg %p224
        %p669 = scmp.lt.s32.totalorder %s43, 1
        %s670 = scalar_select %p669, %s43, 1
        %s671 = smul.addr %s670, 2
        %s672 = scalar_lea.vmem %s8, %s671
        %p673 = pneg %p253
        %p674 = pneg %p250
        %s675 = sand.u32 %s266, 1
        %s676 = scalar_lea.sflag [#allocation10], %s675
        %s677 = sand.u32 %s266, 1
        %s678 = smul.addr %s677, 128
        %s679 = scalar_lea.vmem [#allocation9], %s678
        %p680 = pneg %p279
        %p681 = pneg %p276
        %p682 = scmp.lt.s32.totalorder %s43, 1
        %s683 = scalar_select %p682, %s43, 1
        %s684 = scalar_lea.vmem %s10, %s683
        %p685 = pneg %p305
        %p686 = pneg %p302
        %p687 = scmp.lt.s32.totalorder %s43, 1
        %s688 = scalar_select %p687, %s43, 1
        %s689 = scalar_lea.vmem %s11, %s688
        %p690 = pneg %p331
        %p691 = pneg %p328
        %p692 = scmp.lt.s32.totalorder %s43, 1
        %s693 = scalar_select %p692, %s43, 1
        %s694 = scalar_lea.vmem %s12, %s693
        %p695 = pneg %p357
        %p696 = pneg %p354
        %p697 = pneg %p378
        %p698 = pneg %p375
        %p699 = pneg %p399
        %p700 = pneg %p396
        %p701 = pneg %p425
        %p702 = pneg %p422
        %s703 = sand.u32 %s412, 1
        %s704 = scalar_lea.sflag [#allocation5], %s703
        %s705 = sand.u32 %s412, 1
        %s706 = smul.addr %s705, 8
        %s707 = scalar_lea.vmem [#allocation11], %s706
        %p708 = scmp.lt.s32.totalorder %s43, 1
        %s709 = scalar_select %p708, %s43, 1
        %s710 = smul.addr %s709, 3
        %s711 = scalar_lea.vmem %s2, %s710
        %p712 = scmp.lt.s32.totalorder %s43, 1
        %s713 = scalar_select %p712, %s43, 1
        %s714 = scalar_lea.vmem %s4, %s713
        %p715 = scmp.lt.s32.totalorder %s43, 1
        %s716 = scalar_select %p715, %s43, 1
        %s717 = scalar_lea.vmem %s5, %s716
        %p718 = scmp.lt.s32.totalorder %s43, 1
        %s719 = scalar_select %p718, %s43, 1
        %s720 = scalar_lea.vmem %s6, %s719
        %p721 = scmp.lt.s32.totalorder %s43, 1
        %s722 = scalar_select %p721, %s43, 1
        %s723 = smul.addr %s722, 2
        %s724 = scalar_lea.vmem %s8, %s723
        %p725 = scmp.lt.s32.totalorder %s43, 1
        %s726 = scalar_select %p725, %s43, 1
        %s727 = scalar_lea.vmem %s10, %s726
        %p728 = scmp.lt.s32.totalorder %s43, 1
        %s729 = scalar_select %p728, %s43, 1
        %s730 = scalar_lea.vmem %s11, %s729
        %p731 = scmp.lt.s32.totalorder %s43, 1
        %s732 = scalar_select %p731, %s43, 1
        %s733 = scalar_lea.vmem %s12, %s732
        %p735 = scmp.eq.s32.totalorder %s43, 0
        // Predicated region
        $region93: #{tpu_custom_call.1} parent=75 // pred_check
          %p736 = pneg %p735
        $region94: #{tpu_custom_call.1} parent=75 // pred_check_branch
          %738 = sbr.rel (%p736) target = $region96
        $region95: #{tpu_custom_call.1} parent=75 // pred_region
          %s739 = smul.u32 %s42, 8
          %s740 = smul.addr %s739, 16
          %s741 = scalar_lea.hbm %s0, %s740
          // Predicated region
          $region97: #{tpu_custom_call.1} parent=95 // pred_check
            _
          $region98: #{tpu_custom_call.1} parent=95 // pred_check_branch
            %743 = sbr.rel target = $region100
          $region99: #{tpu_custom_call.1} parent=95 // pred_region
            %744 = sst [smem:[#allocation14]] [#allocation13]
            %745 = sst [smem:[#allocation15]] [#allocation12]
          $region100: #{tpu_custom_call.1} parent=95 // pred_fallthru
            _
          %747 = shalt.err (0)
          %s749 = sshll.u32 %s707, 4
          %s750 = int_to_ptr.vmem [resolvable:$true] %s749
          %752 = dma.hbm_to_vmem [thread:$0]  %s741, 128, %s750, [#allocation2]
          %s753 = smul.u32 8, 1
          %s754 = sshll.u32 %s753, 4
          %755 = dma.done [#allocation2], %s754
        $region96: #{tpu_custom_call.1} parent=75 // pred_fallthru
          _
        %v756 = vld [vmem:[%s707] sm:$0xff]
        %v757 = vpack.c.bf16 %v756, %v756
        %v758 = vld [vmem:[%s595] sm:$0xff]
        %v759 = vld [vmem:[%s595 + $0x8] sm:$0xf]
        %v760 = vld [vmem:[%s595 + $0xc] sm:$0xff]
        %v761 = vld [vmem:[%s595 + $0x14] sm:$0xf]
        %v762 = vld [vmem:[%s595 + $0x18] sm:$0xff]
        %v763 = vld [vmem:[%s595 + $0x20] sm:$0xf]
        %v764 = vld [vmem:[%s595 + $0x24] sm:$0xff]
        %v765 = vld [vmem:[%s595 + $0x2c] sm:$0xf]
        %v766 = vld [vmem:[%s595 + $0x30] sm:$0xff]
        %v767 = vld [vmem:[%s595 + $0x38] sm:$0xf]
        %v768 = vld [vmem:[%s595 + $0x3c] sm:$0xff]
        %v769 = vld [vmem:[%s595 + $0x44] sm:$0xf]
        %v770 = vld [vmem:[%s595 + $0x48] sm:$0xff]
        %v771 = vld [vmem:[%s595 + $0x50] sm:$0xf]
        %v772 = vld [vmem:[%s595 + $0x54] sm:$0xff]
        %v773 = vld [vmem:[%s595 + $0x5c] sm:$0xf]
        %v774 = vld [vmem:[%s595 + $0x60] sm:$0xff]
        %v775 = vld [vmem:[%s595 + $0x68] sm:$0xf]
        %v776 = vld [vmem:[%s595 + $0x6c] sm:$0xff]
        %v777 = vld [vmem:[%s595 + $0x74] sm:$0xf]
        %v778 = vld [vmem:[%s595 + $0x78] sm:$0xff]
        %v779 = vld [vmem:[%s595 + $0x80] sm:$0xf]
        %v780 = vld [vmem:[%s595 + $0x84] sm:$0xff]
        %v781 = vld [vmem:[%s595 + $0x8c] sm:$0xf]
        %v782 = vld [vmem:[%s595 + $0x90] sm:$0xff]
        %v783 = vld [vmem:[%s595 + $0x98] sm:$0xf]
        %v784 = vld [vmem:[%s595 + $0x9c] sm:$0xff]
        %v785 = vld [vmem:[%s595 + $0xa4] sm:$0xf]
        %v786 = vld [vmem:[%s595 + $0xa8] sm:$0xff]
        %v787 = vld [vmem:[%s595 + $0xb0] sm:$0xf]
        %v788 = vld [vmem:[%s595 + $0xb4] sm:$0xff]
        %v789 = vld [vmem:[%s595 + $0xbc] sm:$0xf]
        %v790 = vld [vmem:[%s711] sm:$0x7]
        %v792 = vlaneseq
        %v793 = vshrl.u32 %v792, 7
        %v794 = vsub.s32 0, %v793
        %v795 = vrot.slane %v790, %v794
        %v796 = vlaneseq
        %v797 = vshrl.u32 %v796, 7
        %v798 = vsub.s32 1, %v797
        %v799 = vrot.slane %v790, %v798
        %v800 = vlaneseq
        %v801 = vshrl.u32 %v800, 7
        %v802 = vsub.s32 2, %v801
        %v803 = vrot.slane %v790, %v802
        %v839 = vunpack.c.l.b16 %v758
        %v840 = vunpack.c.h.b16 %v758
        %v841 = vunpack.c.l.b16 %v759
        %v842 = vunpack.c.l.b16 %v760
        %v843 = vunpack.c.h.b16 %v760
        %v844 = vunpack.c.l.b16 %v761
        %v845 = vunpack.c.l.b16 %v762
        %v846 = vunpack.c.h.b16 %v762
        %v847 = vunpack.c.l.b16 %v763
        %v848 = vunpack.c.l.b16 %v764
        %v849 = vunpack.c.h.b16 %v764
        %v850 = vunpack.c.l.b16 %v765
        %v851 = vunpack.c.l.b16 %v766
        %v852 = vunpack.c.h.b16 %v766
        %v853 = vunpack.c.l.b16 %v767
        %v854 = vunpack.c.l.b16 %v768
        %v855 = vunpack.c.h.b16 %v768
        %v856 = vunpack.c.l.b16 %v769
        %v857 = vunpack.c.l.b16 %v770
        %v858 = vunpack.c.h.b16 %v770
        %v859 = vunpack.c.l.b16 %v771
        %v860 = vunpack.c.l.b16 %v772
        %v861 = vunpack.c.h.b16 %v772
        %v862 = vunpack.c.l.b16 %v773
        %v863 = vunpack.c.l.b16 %v774
        %v864 = vunpack.c.h.b16 %v774
        %v865 = vunpack.c.l.b16 %v775
        %v866 = vunpack.c.l.b16 %v776
        %v867 = vunpack.c.h.b16 %v776
        %v868 = vunpack.c.l.b16 %v777
        %v869 = vunpack.c.l.b16 %v778
        %v870 = vunpack.c.h.b16 %v778
        %v871 = vunpack.c.l.b16 %v779
        %v872 = vunpack.c.l.b16 %v780
        %v873 = vunpack.c.h.b16 %v780
        %v874 = vunpack.c.l.b16 %v781
        %v875 = vunpack.c.l.b16 %v782
        %v876 = vunpack.c.h.b16 %v782
        %v877 = vunpack.c.l.b16 %v783
        %v878 = vunpack.c.l.b16 %v784
        %v879 = vunpack.c.h.b16 %v784
        %v880 = vunpack.c.l.b16 %v785
        %v881 = vunpack.c.l.b16 %v786
        %v882 = vunpack.c.h.b16 %v786
        %v883 = vunpack.c.l.b16 %v787
        %v884 = vunpack.c.l.b16 %v788
        %v885 = vunpack.c.h.b16 %v788
        %v886 = vunpack.c.l.b16 %v789
        %v887 = vpack.c.b16 %v842, %v839
        %v888 = vpack.c.b16 %v843, %v840
        %v889 = vpack.c.b16 %v844, %v841
        %v890 = vpack.c.b16 %v848, %v845
        %v891 = vpack.c.b16 %v849, %v846
        %v892 = vpack.c.b16 %v850, %v847
        %v893 = vpack.c.b16 %v854, %v851
        %v894 = vpack.c.b16 %v855, %v852
        %v895 = vpack.c.b16 %v856, %v853
        %v896 = vpack.c.b16 %v860, %v857
        %v897 = vpack.c.b16 %v861, %v858
        %v898 = vpack.c.b16 %v862, %v859
        %v899 = vpack.c.b16 %v866, %v863
        %v900 = vpack.c.b16 %v867, %v864
        %v901 = vpack.c.b16 %v868, %v865
        %v902 = vpack.c.b16 %v872, %v869
        %v903 = vpack.c.b16 %v873, %v870
        %v904 = vpack.c.b16 %v874, %v871
        %v905 = vpack.c.b16 %v878, %v875
        %v906 = vpack.c.b16 %v879, %v876
        %v907 = vpack.c.b16 %v880, %v877
        %v908 = vpack.c.b16 %v884, %v881
        %v909 = vpack.c.b16 %v885, %v882
        %v910 = vpack.c.b16 %v886, %v883
        %935 = vmatprep.subr.bf16.mxu0 %v888
        %936 = vmatpush1.bf16.msra.mxu0 %v887
        %937 = vmatprep.subr.bf16.mxu0 %v891
        %938 = vmatpush1.bf16.msra.mxu0 %v890
        %939 = vmatprep.subr.bf16.mxu0 %v894
        %940 = vmatpush1.bf16.msra.mxu0 %v893
        %941 = vmatprep.subr.bf16.mxu0 %v897
        %942 = vmatpush1.bf16.msra.mxu0 %v896
        %943 = vmatprep.subr.bf16.mxu0 %v900
        %944 = vmatpush1.bf16.msra.mxu0 %v899
        %945 = vmatprep.subr.bf16.mxu0 %v903
        %946 = vmatpush1.bf16.msra.mxu0 %v902
        %947 = vmatprep.subr.bf16.mxu0 %v906
        %948 = vmatpush1.bf16.msra.mxu0 %v905
        %949 = vmatprep.subr.bf16.mxu0 %v909
        %950 = vmatpush1.bf16.msra.mxu0 %v908
        %951 = vmatprep.subr.bf16.mxu0 0
        %952 = vmatpush1.bf16.msra.mxu0 0
        %953 = vmatprep.subr.bf16.mxu0 0
        %954 = vmatpush1.bf16.msra.mxu0 0
        %955 = vmatprep.subr.bf16.mxu0 0
        %956 = vmatpush1.bf16.msra.mxu0 0
        %957 = vmatprep.subr.bf16.mxu0 0
        %958 = vmatpush1.bf16.msra.mxu0 0
        %959 = vmatprep.subr.bf16.mxu0 0
        %960 = vmatpush1.bf16.msra.mxu0 0
        %961 = vmatprep.subr.bf16.mxu0 0
        %962 = vmatpush1.bf16.msra.mxu0 0
        %963 = vmatprep.subr.bf16.mxu0 0
        %964 = vmatpush1.bf16.msra.mxu0 0
        %965 = vmatprep.subr.bf16.mxu0 0
        %966 = vmatpush1.bf16.msra.mxu0 0
        %967 = vmatprep.mubr.bf16.mxu0 0
        %968 = vmatmul.mubr.bf16.gmra.mrb[0].mxu0 %v757
        %v969 = vpop.f32.mrb[0].mxu0
        %v970 = vadd.f32 %v795, %v969
        %v971 = vpop.f32.mrb[0].mxu0
        %v972 = vadd.f32 %v799, %v971
        %v973 = vpop.f32.mrb[0].mxu0
        %v974 = vpop.f32.mrb[0].mxu0
        %975 = vdwg.mxu0
        %976 = vmatprep.subr.bf16.mxu0 0
        %977 = vmatpush1.bf16.msra.mxu0 %v889
        %978 = vmatprep.subr.bf16.mxu0 0
        %979 = vmatpush1.bf16.msra.mxu0 %v892
        %980 = vmatprep.subr.bf16.mxu0 0
        %981 = vmatpush1.bf16.msra.mxu0 %v895
        %982 = vmatprep.subr.bf16.mxu0 0
        %983 = vmatpush1.bf16.msra.mxu0 %v898
        %984 = vmatprep.subr.bf16.mxu0 0
        %985 = vmatpush1.bf16.msra.mxu0 %v901
        %986 = vmatprep.subr.bf16.mxu0 0
        %987 = vmatpush1.bf16.msra.mxu0 %v904
        %988 = vmatprep.subr.bf16.mxu0 0
        %989 = vmatpush1.bf16.msra.mxu0 %v907
        %990 = vmatprep.subr.bf16.mxu0 0
        %991 = vmatpush1.bf16.msra.mxu0 %v910
        %992 = vmatprep.subr.bf16.mxu0 0
        %993 = vmatpush1.bf16.msra.mxu0 0
        %994 = vmatprep.subr.bf16.mxu0 0
        %995 = vmatpush1.bf16.msra.mxu0 0
        %996 = vmatprep.subr.bf16.mxu0 0
        %997 = vmatpush1.bf16.msra.mxu0 0
        %998 = vmatprep.subr.bf16.mxu0 0
        %999 = vmatpush1.bf16.msra.mxu0 0
        %1000 = vmatprep.subr.bf16.mxu0 0
        %1001 = vmatpush1.bf16.msra.mxu0 0
        %1002 = vmatprep.subr.bf16.mxu0 0
        %1003 = vmatpush1.bf16.msra.mxu0 0
        %1004 = vmatprep.subr.bf16.mxu0 0
        %1005 = vmatpush1.bf16.msra.mxu0 0
        %1006 = vmatprep.subr.bf16.mxu0 0
        %1007 = vmatpush1.bf16.msra.mxu0 0
        %1008 = vmatprep.mubr.bf16.mxu0 0
        %1009 = vmatmul.mubr.bf16.gmra.mrb[0].mxu0 %v757
        %v1010 = vpop.f32.mrb[0].mxu0
        %v1011 = vadd.f32 %v803, %v1010
        %v1012 = vpop.f32.mrb[0].mxu0
        %v1013 = vpop.f32.mrb[0].mxu0
        %v1014 = vpop.f32.mrb[0].mxu0
        %1015 = vdwg.mxu0
        %v1016 = vpack.c.bf16 %v970, %v970
        %v1017 = vpack.c.bf16 %v972, %v972
        %v1018 = vpack.c.bf16 %v1011, %v1011
        %vm1019 = vcmask 261120
        %v1021 = vsel %vm1019, %v1016, 0
        %v1024 = vsel %vm1019, %v1017, 0
        %1026 = vmatprep.subr.bf16.mxu0 0
        %1027 = vmatpush1.bf16.xpose.msra.mxu0 %v1024
        %1028 = vmatprep.subr.bf16.mxu0 0
        %1029 = vmatpush1.bf16.xpose.msra.mxu0 0
        %1030 = vmatprep.subr.bf16.mxu0 0
        %1031 = vmatpush1.bf16.xpose.msra.mxu0 0
        %1032 = vmatprep.subr.bf16.mxu0 0
        %1033 = vmatpush1.bf16.xpose.msra.mxu0 0
        %1034 = vmatprep.subr.bf16.mxu0 0
        %1035 = vmatpush1.bf16.xpose.msra.mxu0 0
        %1036 = vmatprep.subr.bf16.mxu0 0
        %1037 = vmatpush1.bf16.xpose.msra.mxu0 0
        %1038 = vmatprep.subr.bf16.mxu0 0
        %1039 = vmatpush1.bf16.xpose.msra.mxu0 0
        %1040 = vmatprep.subr.bf16.mxu0 0
        %1041 = vmatpush1.bf16.xpose.msra.mxu0 0
        %1042 = vmatprep.subr.bf16.mxu0 0
        %1043 = vmatpush1.bf16.xpose.msra.mxu0 0
        %1044 = vmatprep.subr.bf16.mxu0 0
        %1045 = vmatpush1.bf16.xpose.msra.mxu0 0
        %1046 = vmatprep.subr.bf16.mxu0 0
        %1047 = vmatpush1.bf16.xpose.msra.mxu0 0
        %1048 = vmatprep.subr.bf16.mxu0 0
        %1049 = vmatpush1.bf16.xpose.msra.mxu0 0
        %1050 = vmatprep.subr.bf16.mxu0 0
        %1051 = vmatpush1.bf16.xpose.msra.mxu0 0
        %1052 = vmatprep.subr.bf16.mxu0 0
        %1053 = vmatpush1.bf16.xpose.msra.mxu0 0
        %1054 = vmatprep.subr.bf16.mxu0 0
        %1055 = vmatpush1.bf16.xpose.msra.mxu0 0
        %1056 = vmatprep.subr.bf16.mxu0 0
        %1057 = vmatpush1.bf16.xpose.msra.mxu0 0
        %1058 = vmatprep.mubr.bf16.mxu0 0
        %1059 = vmatmul.mubr.bf16.gmra.mrb[0].mxu0 %v1021
        %v1060 = vpop.f32.mrb[0].mxu0
        %v1061 = vadd.f32 0.0, %v1060
        %v1062 = vpop.f32.mrb[0].mxu0
        %v1063 = vpop.f32.mrb[0].mxu0
        %v1064 = vpop.f32.mrb[0].mxu0
        %1065 = vdwg.mxu0
        %vm1066 = vcmask 64512
        %v1067 = vsel %vm1066, %v1061, -inf
        %1068 = vmax.xlane.f32.xlu0 %v1067
        %v1069 = vpop.xlane.xlu0 %1068
        %v1070 = vsub.f32 %v1061, %v1069
        %v1071 = vmul.f32 %v1070, 1.442695
        %v1072 = vpow.pop %v1071
        %v1073 = vsel %vm1066, %v1072, 0.0
        %1074 = vadd.xlane.f32.xlu0 %v1073
        %v1075 = vpop.xlane.xlu0 %1074
        %v1076 = vrcp.pop %v1075
        %v1077 = vmul.f32 %v1072, %v1076
        %v1078 = vpack.c.bf16 %v1077, %v1077
        %v1080 = vsel %vm1066, %v1078, 0
        %vm1082 = vcmask 1043456
        %v1084 = vsel %vm1082, %v1018, 0
        %1086 = vmatprep.subr.bf16.mxu0 0
        %1087 = vmatpush1.bf16.msra.mxu0 %v1084
        %1088 = vmatprep.subr.bf16.mxu0 0
        %1089 = vmatpush1.bf16.msra.mxu0 0
        %1090 = vmatprep.subr.bf16.mxu0 0
        %1091 = vmatpush1.bf16.msra.mxu0 0
        %1092 = vmatprep.subr.bf16.mxu0 0
        %1093 = vmatpush1.bf16.msra.mxu0 0
        %1094 = vmatprep.subr.bf16.mxu0 0
        %1095 = vmatpush1.bf16.msra.mxu0 0
        %1096 = vmatprep.subr.bf16.mxu0 0
        %1097 = vmatpush1.bf16.msra.mxu0 0
        %1098 = vmatprep.subr.bf16.mxu0 0
        %1099 = vmatpush1.bf16.msra.mxu0 0
        %1100 = vmatprep.subr.bf16.mxu0 0
        %1101 = vmatpush1.bf16.msra.mxu0 0
        %1102 = vmatprep.subr.bf16.mxu0 0
        %1103 = vmatpush1.bf16.msra.mxu0 0
        %1104 = vmatprep.subr.bf16.mxu0 0
        %1105 = vmatpush1.bf16.msra.mxu0 0
        %1106 = vmatprep.subr.bf16.mxu0 0
        %1107 = vmatpush1.bf16.msra.mxu0 0
        %1108 = vmatprep.subr.bf16.mxu0 0
        %1109 = vmatpush1.bf16.msra.mxu0 0
        %1110 = vmatprep.subr.bf16.mxu0 0
        %1111 = vmatpush1.bf16.msra.mxu0 0
        %1112 = vmatprep.subr.bf16.mxu0 0
        %1113 = vmatpush1.bf16.msra.mxu0 0
        %1114 = vmatprep.subr.bf16.mxu0 0
        %1115 = vmatpush1.bf16.msra.mxu0 0
        %1116 = vmatprep.subr.bf16.mxu0 0
        %1117 = vmatpush1.bf16.msra.mxu0 0
        %1118 = vmatprep.mubr.bf16.mxu0 0
        %1119 = vmatmul.mubr.bf16.gmra.mrb[0].mxu0 %v1080
        %v1120 = vpop.f32.mrb[0].mxu0
        %v1121 = vadd.f32 0.0, %v1120
        %v1122 = vpop.f32.mrb[0].mxu0
        %v1123 = vpop.f32.mrb[0].mxu0
        %v1124 = vpop.f32.mrb[0].mxu0
        %1125 = vdwg.mxu0
        %1127 = vrot.lane.b32.xlu0 %v1016, 96
        %v1128 = vpop.permute.xlu0 %1127
        %1130 = vrot.lane.b32.xlu0 %v1017, 96
        %v1131 = vpop.permute.xlu0 %1130
        %v1133 = vsel %vm1019, %v1128, 0
        %v1136 = vsel %vm1019, %v1131, 0
        %1138 = vmatprep.subr.bf16.mxu0 0
        %1139 = vmatpush1.bf16.xpose.msra.mxu0 %v1136
        %1140 = vmatprep.subr.bf16.mxu0 0
        %1141 = vmatpush1.bf16.xpose.msra.mxu0 0
        %1142 = vmatprep.subr.bf16.mxu0 0
        %1143 = vmatpush1.bf16.xpose.msra.mxu0 0
        %1144 = vmatprep.subr.bf16.mxu0 0
        %1145 = vmatpush1.bf16.xpose.msra.mxu0 0
        %1146 = vmatprep.subr.bf16.mxu0 0
        %1147 = vmatpush1.bf16.xpose.msra.mxu0 0
        %1148 = vmatprep.subr.bf16.mxu0 0
        %1149 = vmatpush1.bf16.xpose.msra.mxu0 0
        %1150 = vmatprep.subr.bf16.mxu0 0
        %1151 = vmatpush1.bf16.xpose.msra.mxu0 0
        %1152 = vmatprep.subr.bf16.mxu0 0
        %1153 = vmatpush1.bf16.xpose.msra.mxu0 0
        %1154 = vmatprep.subr.bf16.mxu0 0
        %1155 = vmatpush1.bf16.xpose.msra.mxu0 0
        %1156 = vmatprep.subr.bf16.mxu0 0
        %1157 = vmatpush1.bf16.xpose.msra.mxu0 0
        %1158 = vmatprep.subr.bf16.mxu0 0
        %1159 = vmatpush1.bf16.xpose.msra.mxu0 0
        %1160 = vmatprep.subr.bf16.mxu0 0
        %1161 = vmatpush1.bf16.xpose.msra.mxu0 0
        %1162 = vmatprep.subr.bf16.mxu0 0
        %1163 = vmatpush1.bf16.xpose.msra.mxu0 0
        %1164 = vmatprep.subr.bf16.mxu0 0
        %1165 = vmatpush1.bf16.xpose.msra.mxu0 0
        %1166 = vmatprep.subr.bf16.mxu0 0
        %1167 = vmatpush1.bf16.xpose.msra.mxu0 0
        %1168 = vmatprep.subr.bf16.mxu0 0
        %1169 = vmatpush1.bf16.xpose.msra.mxu0 0
        %1170 = vmatprep.mubr.bf16.mxu0 0
        %1171 = vmatmul.mubr.bf16.gmra.mrb[0].mxu0 %v1133
        %v1172 = vpop.f32.mrb[0].mxu0
        %v1173 = vadd.f32 0.0, %v1172
        %v1174 = vpop.f32.mrb[0].mxu0
        %v1175 = vpop.f32.mrb[0].mxu0
        %v1176 = vpop.f32.mrb[0].mxu0
        %1177 = vdwg.mxu0
        %v1178 = vsel %vm1066, %v1173, -inf
        %1179 = vmax.xlane.f32.xlu0 %v1178
        %v1180 = vpop.xlane.xlu0 %1179
        %v1181 = vsub.f32 %v1173, %v1180
        %v1182 = vmul.f32 %v1181, 1.442695
        %v1183 = vpow.pop %v1182
        %v1184 = vsel %vm1066, %v1183, 0.0
        %1185 = vadd.xlane.f32.xlu0 %v1184
        %v1186 = vpop.xlane.xlu0 %1185
        %v1187 = vrcp.pop %v1186
        %v1188 = vmul.f32 %v1183, %v1187
        %v1189 = vpack.c.bf16 %v1188, %v1188
        %1191 = vrot.lane.b32.xlu0 %v1018, 96
        %v1192 = vpop.permute.xlu0 %1191
        %v1194 = vsel %vm1066, %v1189, 0
        %v1197 = vsel %vm1082, %v1192, 0
        %1199 = vmatprep.subr.bf16.mxu0 0
        %1200 = vmatpush1.bf16.msra.mxu0 %v1197
        %1201 = vmatprep.subr.bf16.mxu0 0
        %1202 = vmatpush1.bf16.msra.mxu0 0
        %1203 = vmatprep.subr.bf16.mxu0 0
        %1204 = vmatpush1.bf16.msra.mxu0 0
        %1205 = vmatprep.subr.bf16.mxu0 0
        %1206 = vmatpush1.bf16.msra.mxu0 0
        %1207 = vmatprep.subr.bf16.mxu0 0
        %1208 = vmatpush1.bf16.msra.mxu0 0
        %1209 = vmatprep.subr.bf16.mxu0 0
        %1210 = vmatpush1.bf16.msra.mxu0 0
        %1211 = vmatprep.subr.bf16.mxu0 0
        %1212 = vmatpush1.bf16.msra.mxu0 0
        %1213 = vmatprep.subr.bf16.mxu0 0
        %1214 = vmatpush1.bf16.msra.mxu0 0
        %1215 = vmatprep.subr.bf16.mxu0 0
        %1216 = vmatpush1.bf16.msra.mxu0 0
        %1217 = vmatprep.subr.bf16.mxu0 0
        %1218 = vmatpush1.bf16.msra.mxu0 0
        %1219 = vmatprep.subr.bf16.mxu0 0
        %1220 = vmatpush1.bf16.msra.mxu0 0
        %1221 = vmatprep.subr.bf16.mxu0 0
        %1222 = vmatpush1.bf16.msra.mxu0 0
        %1223 = vmatprep.subr.bf16.mxu0 0
        %1224 = vmatpush1.bf16.msra.mxu0 0
        %1225 = vmatprep.subr.bf16.mxu0 0
        %1226 = vmatpush1.bf16.msra.mxu0 0
        %1227 = vmatprep.subr.bf16.mxu0 0
        %1228 = vmatpush1.bf16.msra.mxu0 0
        %1229 = vmatprep.subr.bf16.mxu0 0
        %1230 = vmatpush1.bf16.msra.mxu0 0
        %1231 = vmatprep.mubr.bf16.mxu0 0
        %1232 = vmatmul.mubr.bf16.gmra.mrb[0].mxu0 %v1194
        %v1233 = vpop.f32.mrb[0].mxu0
        %v1234 = vadd.f32 0.0, %v1233
        %v1235 = vpop.f32.mrb[0].mxu0
        %v1236 = vpop.f32.mrb[0].mxu0
        %v1237 = vpop.f32.mrb[0].mxu0
        %1238 = vdwg.mxu0
        %1239 = vrot.lane.b32.xlu0 %v1016, 64
        %v1240 = vpop.permute.xlu0 %1239
        %1241 = vrot.lane.b32.xlu0 %v1017, 64
        %v1242 = vpop.permute.xlu0 %1241
        %v1244 = vsel %vm1019, %v1240, 0
        %v1247 = vsel %vm1019, %v1242, 0
        %1249 = vmatprep.subr.bf16.mxu0 0
        %1250 = vmatpush1.bf16.xpose.msra.mxu0 %v1247
        %1251 = vmatprep.subr.bf16.mxu0 0
        %1252 = vmatpush1.bf16.xpose.msra.mxu0 0
        %1253 = vmatprep.subr.bf16.mxu0 0
        %1254 = vmatpush1.bf16.xpose.msra.mxu0 0
        %1255 = vmatprep.subr.bf16.mxu0 0
        %1256 = vmatpush1.bf16.xpose.msra.mxu0 0
        %1257 = vmatprep.subr.bf16.mxu0 0
        %1258 = vmatpush1.bf16.xpose.msra.mxu0 0
        %1259 = vmatprep.subr.bf16.mxu0 0
        %1260 = vmatpush1.bf16.xpose.msra.mxu0 0
        %1261 = vmatprep.subr.bf16.mxu0 0
        %1262 = vmatpush1.bf16.xpose.msra.mxu0 0
        %1263 = vmatprep.subr.bf16.mxu0 0
        %1264 = vmatpush1.bf16.xpose.msra.mxu0 0
        %1265 = vmatprep.subr.bf16.mxu0 0
        %1266 = vmatpush1.bf16.xpose.msra.mxu0 0
        %1267 = vmatprep.subr.bf16.mxu0 0
        %1268 = vmatpush1.bf16.xpose.msra.mxu0 0
        %1269 = vmatprep.subr.bf16.mxu0 0
        %1270 = vmatpush1.bf16.xpose.msra.mxu0 0
        %1271 = vmatprep.subr.bf16.mxu0 0
        %1272 = vmatpush1.bf16.xpose.msra.mxu0 0
        %1273 = vmatprep.subr.bf16.mxu0 0
        %1274 = vmatpush1.bf16.xpose.msra.mxu0 0
        %1275 = vmatprep.subr.bf16.mxu0 0
        %1276 = vmatpush1.bf16.xpose.msra.mxu0 0
        %1277 = vmatprep.subr.bf16.mxu0 0
        %1278 = vmatpush1.bf16.xpose.msra.mxu0 0
        %1279 = vmatprep.subr.bf16.mxu0 0
        %1280 = vmatpush1.bf16.xpose.msra.mxu0 0
        %1281 = vmatprep.mubr.bf16.mxu0 0
        %1282 = vmatmul.mubr.bf16.gmra.mrb[0].mxu0 %v1244
        %v1283 = vpop.f32.mrb[0].mxu0
        %v1284 = vadd.f32 0.0, %v1283
        %v1285 = vpop.f32.mrb[0].mxu0
        %v1286 = vpop.f32.mrb[0].mxu0
        %v1287 = vpop.f32.mrb[0].mxu0
        %1288 = vdwg.mxu0
        %v1289 = vsel %vm1066, %v1284, -inf
        %1290 = vmax.xlane.f32.xlu0 %v1289
        %v1291 = vpop.xlane.xlu0 %1290
        %v1292 = vsub.f32 %v1284, %v1291
        %v1293 = vmul.f32 %v1292, 1.442695
        %v1294 = vpow.pop %v1293
        %v1295 = vsel %vm1066, %v1294, 0.0
        %1296 = vadd.xlane.f32.xlu0 %v1295
        %v1297 = vpop.xlane.xlu0 %1296
        %v1298 = vrcp.pop %v1297
        %v1299 = vmul.f32 %v1294, %v1298
        %v1300 = vpack.c.bf16 %v1299, %v1299
        %1301 = vrot.lane.b32.xlu0 %v1018, 64
        %v1302 = vpop.permute.xlu0 %1301
        %v1304 = vsel %vm1066, %v1300, 0
        %v1307 = vsel %vm1082, %v1302, 0
        %1309 = vmatprep.subr.bf16.mxu0 0
        %1310 = vmatpush1.bf16.msra.mxu0 %v1307
        %1311 = vmatprep.subr.bf16.mxu0 0
        %1312 = vmatpush1.bf16.msra.mxu0 0
        %1313 = vmatprep.subr.bf16.mxu0 0
        %1314 = vmatpush1.bf16.msra.mxu0 0
        %1315 = vmatprep.subr.bf16.mxu0 0
        %1316 = vmatpush1.bf16.msra.mxu0 0
        %1317 = vmatprep.subr.bf16.mxu0 0
        %1318 = vmatpush1.bf16.msra.mxu0 0
        %1319 = vmatprep.subr.bf16.mxu0 0
        %1320 = vmatpush1.bf16.msra.mxu0 0
        %1321 = vmatprep.subr.bf16.mxu0 0
        %1322 = vmatpush1.bf16.msra.mxu0 0
        %1323 = vmatprep.subr.bf16.mxu0 0
        %1324 = vmatpush1.bf16.msra.mxu0 0
        %1325 = vmatprep.subr.bf16.mxu0 0
        %1326 = vmatpush1.bf16.msra.mxu0 0
        %1327 = vmatprep.subr.bf16.mxu0 0
        %1328 = vmatpush1.bf16.msra.mxu0 0
        %1329 = vmatprep.subr.bf16.mxu0 0
        %1330 = vmatpush1.bf16.msra.mxu0 0
        %1331 = vmatprep.subr.bf16.mxu0 0
        %1332 = vmatpush1.bf16.msra.mxu0 0
        %1333 = vmatprep.subr.bf16.mxu0 0
        %1334 = vmatpush1.bf16.msra.mxu0 0
        %1335 = vmatprep.subr.bf16.mxu0 0
        %1336 = vmatpush1.bf16.msra.mxu0 0
        %1337 = vmatprep.subr.bf16.mxu0 0
        %1338 = vmatpush1.bf16.msra.mxu0 0
        %1339 = vmatprep.subr.bf16.mxu0 0
        %1340 = vmatpush1.bf16.msra.mxu0 0
        %1341 = vmatprep.mubr.bf16.mxu0 0
        %1342 = vmatmul.mubr.bf16.gmra.mrb[0].mxu0 %v1304
        %v1343 = vpop.f32.mrb[0].mxu0
        %v1344 = vadd.f32 0.0, %v1343
        %v1345 = vpop.f32.mrb[0].mxu0
        %v1346 = vpop.f32.mrb[0].mxu0
        %v1347 = vpop.f32.mrb[0].mxu0
        %1348 = vdwg.mxu0
        %1349 = vrot.lane.b32.xlu0 %v1016, 32
        %v1350 = vpop.permute.xlu0 %1349
        %1351 = vrot.lane.b32.xlu0 %v1017, 32
        %v1352 = vpop.permute.xlu0 %1351
        %v1354 = vsel %vm1019, %v1350, 0
        %v1357 = vsel %vm1019, %v1352, 0
        %1359 = vmatprep.subr.bf16.mxu0 0
        %1360 = vmatpush1.bf16.xpose.msra.mxu0 %v1357
        %1361 = vmatprep.subr.bf16.mxu0 0
        %1362 = vmatpush1.bf16.xpose.msra.mxu0 0
        %1363 = vmatprep.subr.bf16.mxu0 0
        %1364 = vmatpush1.bf16.xpose.msra.mxu0 0
        %1365 = vmatprep.subr.bf16.mxu0 0
        %1366 = vmatpush1.bf16.xpose.msra.mxu0 0
        %1367 = vmatprep.subr.bf16.mxu0 0
        %1368 = vmatpush1.bf16.xpose.msra.mxu0 0
        %1369 = vmatprep.subr.bf16.mxu0 0
        %1370 = vmatpush1.bf16.xpose.msra.mxu0 0
        %1371 = vmatprep.subr.bf16.mxu0 0
        %1372 = vmatpush1.bf16.xpose.msra.mxu0 0
        %1373 = vmatprep.subr.bf16.mxu0 0
        %1374 = vmatpush1.bf16.xpose.msra.mxu0 0
        %1375 = vmatprep.subr.bf16.mxu0 0
        %1376 = vmatpush1.bf16.xpose.msra.mxu0 0
        %1377 = vmatprep.subr.bf16.mxu0 0
        %1378 = vmatpush1.bf16.xpose.msra.mxu0 0
        %1379 = vmatprep.subr.bf16.mxu0 0
        %1380 = vmatpush1.bf16.xpose.msra.mxu0 0
        %1381 = vmatprep.subr.bf16.mxu0 0
        %1382 = vmatpush1.bf16.xpose.msra.mxu0 0
        %1383 = vmatprep.subr.bf16.mxu0 0
        %1384 = vmatpush1.bf16.xpose.msra.mxu0 0
        %1385 = vmatprep.subr.bf16.mxu0 0
        %1386 = vmatpush1.bf16.xpose.msra.mxu0 0
        %1387 = vmatprep.subr.bf16.mxu0 0
        %1388 = vmatpush1.bf16.xpose.msra.mxu0 0
        %1389 = vmatprep.subr.bf16.mxu0 0
        %1390 = vmatpush1.bf16.xpose.msra.mxu0 0
        %1391 = vmatprep.mubr.bf16.mxu0 0
        %1392 = vmatmul.mubr.bf16.gmra.mrb[0].mxu0 %v1354
        %v1393 = vpop.f32.mrb[0].mxu0
        %v1394 = vadd.f32 0.0, %v1393
        %v1395 = vpop.f32.mrb[0].mxu0
        %v1396 = vpop.f32.mrb[0].mxu0
        %v1397 = vpop.f32.mrb[0].mxu0
        %1398 = vdwg.mxu0
        %v1399 = vsel %vm1066, %v1394, -inf
        %1400 = vmax.xlane.f32.xlu0 %v1399
        %v1401 = vpop.xlane.xlu0 %1400
        %v1402 = vsub.f32 %v1394, %v1401
        %v1403 = vmul.f32 %v1402, 1.442695
        %v1404 = vpow.pop %v1403
        %v1405 = vsel %vm1066, %v1404, 0.0
        %1406 = vadd.xlane.f32.xlu0 %v1405
        %v1407 = vpop.xlane.xlu0 %1406
        %v1408 = vrcp.pop %v1407
        %v1409 = vmul.f32 %v1404, %v1408
        %v1410 = vpack.c.bf16 %v1409, %v1409
        %1411 = vrot.lane.b32.xlu0 %v1018, 32
        %v1412 = vpop.permute.xlu0 %1411
        %v1414 = vsel %vm1066, %v1410, 0
        %v1417 = vsel %vm1082, %v1412, 0
        %1419 = vmatprep.subr.bf16.mxu0 0
        %1420 = vmatpush1.bf16.msra.mxu0 %v1417
        %1421 = vmatprep.subr.bf16.mxu0 0
        %1422 = vmatpush1.bf16.msra.mxu0 0
        %1423 = vmatprep.subr.bf16.mxu0 0
        %1424 = vmatpush1.bf16.msra.mxu0 0
        %1425 = vmatprep.subr.bf16.mxu0 0
        %1426 = vmatpush1.bf16.msra.mxu0 0
        %1427 = vmatprep.subr.bf16.mxu0 0
        %1428 = vmatpush1.bf16.msra.mxu0 0
        %1429 = vmatprep.subr.bf16.mxu0 0
        %1430 = vmatpush1.bf16.msra.mxu0 0
        %1431 = vmatprep.subr.bf16.mxu0 0
        %1432 = vmatpush1.bf16.msra.mxu0 0
        %1433 = vmatprep.subr.bf16.mxu0 0
        %1434 = vmatpush1.bf16.msra.mxu0 0
        %1435 = vmatprep.subr.bf16.mxu0 0
        %1436 = vmatpush1.bf16.msra.mxu0 0
        %1437 = vmatprep.subr.bf16.mxu0 0
        %1438 = vmatpush1.bf16.msra.mxu0 0
        %1439 = vmatprep.subr.bf16.mxu0 0
        %1440 = vmatpush1.bf16.msra.mxu0 0
        %1441 = vmatprep.subr.bf16.mxu0 0
        %1442 = vmatpush1.bf16.msra.mxu0 0
        %1443 = vmatprep.subr.bf16.mxu0 0
        %1444 = vmatpush1.bf16.msra.mxu0 0
        %1445 = vmatprep.subr.bf16.mxu0 0
        %1446 = vmatpush1.bf16.msra.mxu0 0
        %1447 = vmatprep.subr.bf16.mxu0 0
        %1448 = vmatpush1.bf16.msra.mxu0 0
        %1449 = vmatprep.subr.bf16.mxu0 0
        %1450 = vmatpush1.bf16.msra.mxu0 0
        %1451 = vmatprep.mubr.bf16.mxu0 0
        %1452 = vmatmul.mubr.bf16.gmra.mrb[0].mxu0 %v1414
        %v1453 = vpop.f32.mrb[0].mxu0
        %v1454 = vadd.f32 0.0, %v1453
        %v1455 = vpop.f32.mrb[0].mxu0
        %v1456 = vpop.f32.mrb[0].mxu0
        %v1457 = vpop.f32.mrb[0].mxu0
        %1458 = vdwg.mxu0
        %1460 = vrot.lane.b32.xlu0 %v1234, 32
        %v1461 = vpop.permute.xlu0 %1460
        %1464 = vrot.lane.b32.xlu0 %v1344, 64
        %v1465 = vpop.permute.xlu0 %1464
        %1468 = vrot.lane.b32.xlu0 %v1454, 96
        %v1469 = vpop.permute.xlu0 %1468
        %v1471 = vsel %vm1019, %v1121, %v1461
        %vm1472 = vcmask 523264
        %v1473 = vsel %vm1472, %v1471, %v1465
        %vm1474 = vcmask 785408
        %v1475 = vsel %vm1474, %v1473, %v1469
        %v1476 = vpack.c.bf16 %v1475, %v1475
        %v1477 = vld [vmem:[%s604] sm:$0xf]
        %v1478 = vld [vmem:[%s604 + $0x4] sm:$0xf]
        %v1479 = vld [vmem:[%s604 + $0x8] sm:$0xf]
        %v1480 = vld [vmem:[%s604 + $0xc] sm:$0xf]
        %v1481 = vld [vmem:[%s604 + $0x10] sm:$0xf]
        %v1482 = vld [vmem:[%s604 + $0x14] sm:$0xf]
        %v1483 = vld [vmem:[%s604 + $0x18] sm:$0xf]
        %v1484 = vld [vmem:[%s604 + $0x1c] sm:$0xf]
        %v1485 = vld [vmem:[%s604 + $0x20] sm:$0xf]
        %v1486 = vld [vmem:[%s604 + $0x24] sm:$0xf]
        %v1487 = vld [vmem:[%s604 + $0x28] sm:$0xf]
        %v1488 = vld [vmem:[%s604 + $0x2c] sm:$0xf]
        %v1489 = vld [vmem:[%s604 + $0x30] sm:$0xf]
        %v1490 = vld [vmem:[%s604 + $0x34] sm:$0xf]
        %v1491 = vld [vmem:[%s604 + $0x38] sm:$0xf]
        %v1492 = vld [vmem:[%s604 + $0x3c] sm:$0xf]
        %v1493 = vld [vmem:[%s714] sm:$0x1]
        %v1495 = vlaneseq
        %v1496 = vshrl.u32 %v1495, 7
        %v1497 = vsub.s32 0, %v1496
        %v1498 = vrot.slane %v1493, %v1497
        %v1516 = vunpack.c.l.b16 %v1477
        %v1517 = vunpack.c.l.b16 %v1478
        %v1518 = vunpack.c.l.b16 %v1479
        %v1519 = vunpack.c.l.b16 %v1480
        %v1520 = vunpack.c.l.b16 %v1481
        %v1521 = vunpack.c.l.b16 %v1482
        %v1522 = vunpack.c.l.b16 %v1483
        %v1523 = vunpack.c.l.b16 %v1484
        %v1524 = vunpack.c.l.b16 %v1485
        %v1525 = vunpack.c.l.b16 %v1486
        %v1526 = vunpack.c.l.b16 %v1487
        %v1527 = vunpack.c.l.b16 %v1488
        %v1528 = vunpack.c.l.b16 %v1489
        %v1529 = vunpack.c.l.b16 %v1490
        %v1530 = vunpack.c.l.b16 %v1491
        %v1531 = vunpack.c.l.b16 %v1492
        %v1532 = vpack.c.b16 %v1517, %v1516
        %v1533 = vpack.c.b16 %v1519, %v1518
        %v1534 = vpack.c.b16 %v1521, %v1520
        %v1535 = vpack.c.b16 %v1523, %v1522
        %v1536 = vpack.c.b16 %v1525, %v1524
        %v1537 = vpack.c.b16 %v1527, %v1526
        %v1538 = vpack.c.b16 %v1529, %v1528
        %v1539 = vpack.c.b16 %v1531, %v1530
        %1548 = vmatprep.subr.bf16.mxu0 0
        %1549 = vmatpush1.bf16.msra.mxu0 %v1532
        %1550 = vmatprep.subr.bf16.mxu0 0
        %1551 = vmatpush1.bf16.msra.mxu0 %v1533
        %1552 = vmatprep.subr.bf16.mxu0 0
        %1553 = vmatpush1.bf16.msra.mxu0 %v1534
        %1554 = vmatprep.subr.bf16.mxu0 0
        %1555 = vmatpush1.bf16.msra.mxu0 %v1535
        %1556 = vmatprep.subr.bf16.mxu0 0
        %1557 = vmatpush1.bf16.msra.mxu0 %v1536
        %1558 = vmatprep.subr.bf16.mxu0 0
        %1559 = vmatpush1.bf16.msra.mxu0 %v1537
        %1560 = vmatprep.subr.bf16.mxu0 0
        %1561 = vmatpush1.bf16.msra.mxu0 %v1538
        %1562 = vmatprep.subr.bf16.mxu0 0
        %1563 = vmatpush1.bf16.msra.mxu0 %v1539
        %1564 = vmatprep.subr.bf16.mxu0 0
        %1565 = vmatpush1.bf16.msra.mxu0 0
        %1566 = vmatprep.subr.bf16.mxu0 0
        %1567 = vmatpush1.bf16.msra.mxu0 0
        %1568 = vmatprep.subr.bf16.mxu0 0
        %1569 = vmatpush1.bf16.msra.mxu0 0
        %1570 = vmatprep.subr.bf16.mxu0 0
        %1571 = vmatpush1.bf16.msra.mxu0 0
        %1572 = vmatprep.subr.bf16.mxu0 0
        %1573 = vmatpush1.bf16.msra.mxu0 0
        %1574 = vmatprep.subr.bf16.mxu0 0
        %1575 = vmatpush1.bf16.msra.mxu0 0
        %1576 = vmatprep.subr.bf16.mxu0 0
        %1577 = vmatpush1.bf16.msra.mxu0 0
        %1578 = vmatprep.subr.bf16.mxu0 0
        %1579 = vmatpush1.bf16.msra.mxu0 0
        %1580 = vmatprep.mubr.bf16.mxu0 0
        %1581 = vmatmul.mubr.bf16.gmra.mrb[0].mxu0 %v1476
        %v1582 = vpop.f32.mrb[0].mxu0
        %v1583 = vadd.f32 %v1498, %v1582
        %v1584 = vpop.f32.mrb[0].mxu0
        %v1585 = vpop.f32.mrb[0].mxu0
        %v1586 = vpop.f32.mrb[0].mxu0
        %1587 = vdwg.mxu0
        %v1588 = vadd.f32 %v756, %v1583
        %v1589 = vld [vmem:[%s717] sm:$0x1]
        %v1590 = vld [vmem:[%s720] sm:$0x1]
        %1591 = vadd.xlane.f32.xlu0 %v1588
        %v1592 = vpop.xlane.xlu0 %1591
        %v1593 = vrcp.pop 128.0
        %v1594 = vmul.f32 %v1592, %v1593
        %v1595 = vsub.f32 %v1588, %v1594
        %v1596 = vmul.f32 %v1595, %v1595
        %1597 = vadd.xlane.f32.xlu0 %v1596
        %v1598 = vpop.xlane.xlu0 %1597
        %v1599 = vmul.f32 %v1598, 0.007874016
        %v1600 = vrsqrt.pop %v1599
        %v1601 = vmul.f32 %v1599, %v1600
        %vm1602 = vcmp.eq.f32.partialorder %v1599, inf
        %v1603 = vsel %vm1602, %v1599, %v1601
        %vm1604 = vcmp.eq.f32.partialorder %v1599, 0.0
        %v1605 = vand.u32 %v1599, 2147483648
        %v1606 = vsel %vm1604, %v1605, %v1603
        %v1607 = vadd.f32 %v1606, 1e-06
        %v1608 = vrcp.pop %v1607
        %v1610 = vlaneseq
        %v1611 = vshrl.u32 %v1610, 7
        %v1612 = vsub.s32 0, %v1611
        %v1613 = vrot.slane %v1589, %v1612
        %v1615 = vmul.f32 %v1613, %v1595
        %v1616 = vmul.f32 %v1615, %v1608
        %v1618 = vlaneseq
        %v1619 = vshrl.u32 %v1618, 7
        %v1620 = vsub.s32 0, %v1619
        %v1621 = vrot.slane %v1590, %v1620
        %v1623 = vadd.f32 %v1616, %v1621
        %v1624 = vpack.c.bf16 %v1623, %v1623
        %v1625 = vld [vmem:[%s613] sm:$0xff]
        %v1626 = vld [vmem:[%s613 + $0x8] sm:$0xff]
        %v1627 = vld [vmem:[%s613 + $0x10] sm:$0xff]
        %v1628 = vld [vmem:[%s613 + $0x18] sm:$0xff]
        %v1629 = vld [vmem:[%s613 + $0x20] sm:$0xff]
        %v1630 = vld [vmem:[%s613 + $0x28] sm:$0xff]
        %v1631 = vld [vmem:[%s613 + $0x30] sm:$0xff]
        %v1632 = vld [vmem:[%s613 + $0x38] sm:$0xff]
        %v1633 = vld [vmem:[%s613 + $0x40] sm:$0xff]
        %v1634 = vld [vmem:[%s613 + $0x48] sm:$0xff]
        %v1635 = vld [vmem:[%s613 + $0x50] sm:$0xff]
        %v1636 = vld [vmem:[%s613 + $0x58] sm:$0xff]
        %v1637 = vld [vmem:[%s613 + $0x60] sm:$0xff]
        %v1638 = vld [vmem:[%s613 + $0x68] sm:$0xff]
        %v1639 = vld [vmem:[%s613 + $0x70] sm:$0xff]
        %v1640 = vld [vmem:[%s613 + $0x78] sm:$0xff]
        %v1641 = vld [vmem:[%s724] sm:$0x3]
        %v1643 = vlaneseq
        %v1644 = vshrl.u32 %v1643, 7
        %v1645 = vsub.s32 0, %v1644
        %v1646 = vrot.slane %v1641, %v1645
        %v1647 = vlaneseq
        %v1648 = vshrl.u32 %v1647, 7
        %v1649 = vsub.s32 1, %v1648
        %v1650 = vrot.slane %v1641, %v1649
        %v1669 = vunpack.c.l.b16 %v1625
        %v1670 = vunpack.c.h.b16 %v1625
        %v1671 = vunpack.c.l.b16 %v1626
        %v1672 = vunpack.c.h.b16 %v1626
        %v1673 = vunpack.c.l.b16 %v1627
        %v1674 = vunpack.c.h.b16 %v1627
        %v1675 = vunpack.c.l.b16 %v1628
        %v1676 = vunpack.c.h.b16 %v1628
        %v1677 = vunpack.c.l.b16 %v1629
        %v1678 = vunpack.c.h.b16 %v1629
        %v1679 = vunpack.c.l.b16 %v1630
        %v1680 = vunpack.c.h.b16 %v1630
        %v1681 = vunpack.c.l.b16 %v1631
        %v1682 = vunpack.c.h.b16 %v1631
        %v1683 = vunpack.c.l.b16 %v1632
        %v1684 = vunpack.c.h.b16 %v1632
        %v1685 = vunpack.c.l.b16 %v1633
        %v1686 = vunpack.c.h.b16 %v1633
        %v1687 = vunpack.c.l.b16 %v1634
        %v1688 = vunpack.c.h.b16 %v1634
        %v1689 = vunpack.c.l.b16 %v1635
        %v1690 = vunpack.c.h.b16 %v1635
        %v1691 = vunpack.c.l.b16 %v1636
        %v1692 = vunpack.c.h.b16 %v1636
        %v1693 = vunpack.c.l.b16 %v1637
        %v1694 = vunpack.c.h.b16 %v1637
        %v1695 = vunpack.c.l.b16 %v1638
        %v1696 = vunpack.c.h.b16 %v1638
        %v1697 = vunpack.c.l.b16 %v1639
        %v1698 = vunpack.c.h.b16 %v1639
        %v1699 = vunpack.c.l.b16 %v1640
        %v1700 = vunpack.c.h.b16 %v1640
        %v1701 = vpack.c.b16 %v1671, %v1669
        %v1702 = vpack.c.b16 %v1672, %v1670
        %v1703 = vpack.c.b16 %v1675, %v1673
        %v1704 = vpack.c.b16 %v1676, %v1674
        %v1705 = vpack.c.b16 %v1679, %v1677
        %v1706 = vpack.c.b16 %v1680, %v1678
        %v1707 = vpack.c.b16 %v1683, %v1681
        %v1708 = vpack.c.b16 %v1684, %v1682
        %v1709 = vpack.c.b16 %v1687, %v1685
        %v1710 = vpack.c.b16 %v1688, %v1686
        %v1711 = vpack.c.b16 %v1691, %v1689
        %v1712 = vpack.c.b16 %v1692, %v1690
        %v1713 = vpack.c.b16 %v1695, %v1693
        %v1714 = vpack.c.b16 %v1696, %v1694
        %v1715 = vpack.c.b16 %v1699, %v1697
        %v1716 = vpack.c.b16 %v1700, %v1698
        %1733 = vmatprep.subr.bf16.mxu0 %v1702
        %1734 = vmatpush1.bf16.msra.mxu0 %v1701
        %1735 = vmatprep.subr.bf16.mxu0 %v1704
        %1736 = vmatpush1.bf16.msra.mxu0 %v1703
        %1737 = vmatprep.subr.bf16.mxu0 %v1706
        %1738 = vmatpush1.bf16.msra.mxu0 %v1705
        %1739 = vmatprep.subr.bf16.mxu0 %v1708
        %1740 = vmatpush1.bf16.msra.mxu0 %v1707
        %1741 = vmatprep.subr.bf16.mxu0 %v1710
        %1742 = vmatpush1.bf16.msra.mxu0 %v1709
        %1743 = vmatprep.subr.bf16.mxu0 %v1712
        %1744 = vmatpush1.bf16.msra.mxu0 %v1711
        %1745 = vmatprep.subr.bf16.mxu0 %v1714
        %1746 = vmatpush1.bf16.msra.mxu0 %v1713
        %1747 = vmatprep.subr.bf16.mxu0 %v1716
        %1748 = vmatpush1.bf16.msra.mxu0 %v1715
        %1749 = vmatprep.subr.bf16.mxu0 0
        %1750 = vmatpush1.bf16.msra.mxu0 0
        %1751 = vmatprep.subr.bf16.mxu0 0
        %1752 = vmatpush1.bf16.msra.mxu0 0
        %1753 = vmatprep.subr.bf16.mxu0 0
        %1754 = vmatpush1.bf16.msra.mxu0 0
        %1755 = vmatprep.subr.bf16.mxu0 0
        %1756 = vmatpush1.bf16.msra.mxu0 0
        %1757 = vmatprep.subr.bf16.mxu0 0
        %1758 = vmatpush1.bf16.msra.mxu0 0
        %1759 = vmatprep.subr.bf16.mxu0 0
        %1760 = vmatpush1.bf16.msra.mxu0 0
        %1761 = vmatprep.subr.bf16.mxu0 0
        %1762 = vmatpush1.bf16.msra.mxu0 0
        %1763 = vmatprep.subr.bf16.mxu0 0
        %1764 = vmatpush1.bf16.msra.mxu0 0
        %1765 = vmatprep.mubr.bf16.mxu0 0
        %1766 = vmatmul.mubr.bf16.gmra.mrb[0].mxu0 %v1624
        %v1767 = vpop.f32.mrb[0].mxu0
        %v1768 = vadd.f32 %v1646, %v1767
        %v1769 = vpop.f32.mrb[0].mxu0
        %v1770 = vadd.f32 %v1650, %v1769
        %v1771 = vpop.f32.mrb[0].mxu0
        %v1772 = vpop.f32.mrb[0].mxu0
        %1773 = vdwg.mxu0
        %v1774 = vmax.f32 %v1768, 0.0
        %v1775 = vmax.f32 %v1770, 0.0
        %v1776 = vpack.c.bf16 %v1774, %v1774
        %v1777 = vpack.c.bf16 %v1775, %v1775
        %v1778 = vld [vmem:[%s622] sm:$0xf]
        %v1779 = vld [vmem:[%s622 + $0x4] sm:$0xf]
        %v1780 = vld [vmem:[%s622 + $0x8] sm:$0xf]
        %v1781 = vld [vmem:[%s622 + $0xc] sm:$0xf]
        %v1782 = vld [vmem:[%s622 + $0x10] sm:$0xf]
        %v1783 = vld [vmem:[%s622 + $0x14] sm:$0xf]
        %v1784 = vld [vmem:[%s622 + $0x18] sm:$0xf]
        %v1785 = vld [vmem:[%s622 + $0x1c] sm:$0xf]
        %v1786 = vld [vmem:[%s622 + $0x20] sm:$0xf]
        %v1787 = vld [vmem:[%s622 + $0x24] sm:$0xf]
        %v1788 = vld [vmem:[%s622 + $0x28] sm:$0xf]
        %v1789 = vld [vmem:[%s622 + $0x2c] sm:$0xf]
        %v1790 = vld [vmem:[%s622 + $0x30] sm:$0xf]
        %v1791 = vld [vmem:[%s622 + $0x34] sm:$0xf]
        %v1792 = vld [vmem:[%s622 + $0x38] sm:$0xf]
        %v1793 = vld [vmem:[%s622 + $0x3c] sm:$0xf]
        %v1794 = vld [vmem:[%s622 + $0x40] sm:$0xf]
        %v1795 = vld [vmem:[%s622 + $0x44] sm:$0xf]
        %v1796 = vld [vmem:[%s622 + $0x48] sm:$0xf]
        %v1797 = vld [vmem:[%s622 + $0x4c] sm:$0xf]
        %v1798 = vld [vmem:[%s622 + $0x50] sm:$0xf]
        %v1799 = vld [vmem:[%s622 + $0x54] sm:$0xf]
        %v1800 = vld [vmem:[%s622 + $0x58] sm:$0xf]
        %v1801 = vld [vmem:[%s622 + $0x5c] sm:$0xf]
        %v1802 = vld [vmem:[%s622 + $0x60] sm:$0xf]
        %v1803 = vld [vmem:[%s622 + $0x64] sm:$0xf]
        %v1804 = vld [vmem:[%s622 + $0x68] sm:$0xf]
        %v1805 = vld [vmem:[%s622 + $0x6c] sm:$0xf]
        %v1806 = vld [vmem:[%s622 + $0x70] sm:$0xf]
        %v1807 = vld [vmem:[%s622 + $0x74] sm:$0xf]
        %v1808 = vld [vmem:[%s622 + $0x78] sm:$0xf]
        %v1809 = vld [vmem:[%s622 + $0x7c] sm:$0xf]
        %v1810 = vld [vmem:[%s727] sm:$0x1]
        %v1812 = vlaneseq
        %v1813 = vshrl.u32 %v1812, 7
        %v1814 = vsub.s32 0, %v1813
        %v1815 = vrot.slane %v1810, %v1814
        %v1849 = vunpack.c.l.b16 %v1778
        %v1850 = vunpack.c.l.b16 %v1779
        %v1851 = vunpack.c.l.b16 %v1780
        %v1852 = vunpack.c.l.b16 %v1781
        %v1853 = vunpack.c.l.b16 %v1782
        %v1854 = vunpack.c.l.b16 %v1783
        %v1855 = vunpack.c.l.b16 %v1784
        %v1856 = vunpack.c.l.b16 %v1785
        %v1857 = vunpack.c.l.b16 %v1786
        %v1858 = vunpack.c.l.b16 %v1787
        %v1859 = vunpack.c.l.b16 %v1788
        %v1860 = vunpack.c.l.b16 %v1789
        %v1861 = vunpack.c.l.b16 %v1790
        %v1862 = vunpack.c.l.b16 %v1791
        %v1863 = vunpack.c.l.b16 %v1792
        %v1864 = vunpack.c.l.b16 %v1793
        %v1865 = vunpack.c.l.b16 %v1794
        %v1866 = vunpack.c.l.b16 %v1795
        %v1867 = vunpack.c.l.b16 %v1796
        %v1868 = vunpack.c.l.b16 %v1797
        %v1869 = vunpack.c.l.b16 %v1798
        %v1870 = vunpack.c.l.b16 %v1799
        %v1871 = vunpack.c.l.b16 %v1800
        %v1872 = vunpack.c.l.b16 %v1801
        %v1873 = vunpack.c.l.b16 %v1802
        %v1874 = vunpack.c.l.b16 %v1803
        %v1875 = vunpack.c.l.b16 %v1804
        %v1876 = vunpack.c.l.b16 %v1805
        %v1877 = vunpack.c.l.b16 %v1806
        %v1878 = vunpack.c.l.b16 %v1807
        %v1879 = vunpack.c.l.b16 %v1808
        %v1880 = vunpack.c.l.b16 %v1809
        %v1881 = vpack.c.b16 %v1850, %v1849
        %v1882 = vpack.c.b16 %v1852, %v1851
        %v1883 = vpack.c.b16 %v1854, %v1853
        %v1884 = vpack.c.b16 %v1856, %v1855
        %v1885 = vpack.c.b16 %v1858, %v1857
        %v1886 = vpack.c.b16 %v1860, %v1859
        %v1887 = vpack.c.b16 %v1862, %v1861
        %v1888 = vpack.c.b16 %v1864, %v1863
        %v1889 = vpack.c.b16 %v1866, %v1865
        %v1890 = vpack.c.b16 %v1868, %v1867
        %v1891 = vpack.c.b16 %v1870, %v1869
        %v1892 = vpack.c.b16 %v1872, %v1871
        %v1893 = vpack.c.b16 %v1874, %v1873
        %v1894 = vpack.c.b16 %v1876, %v1875
        %v1895 = vpack.c.b16 %v1878, %v1877
        %v1896 = vpack.c.b16 %v1880, %v1879
        %1913 = vmatprep.subr.bf16.mxu0 0
        %1914 = vmatpush1.bf16.msra.mxu0 %v1881
        %1915 = vmatprep.subr.bf16.mxu0 0
        %1916 = vmatpush1.bf16.msra.mxu0 %v1882
        %1917 = vmatprep.subr.bf16.mxu0 0
        %1918 = vmatpush1.bf16.msra.mxu0 %v1883
        %1919 = vmatprep.subr.bf16.mxu0 0
        %1920 = vmatpush1.bf16.msra.mxu0 %v1884
        %1921 = vmatprep.subr.bf16.mxu0 0
        %1922 = vmatpush1.bf16.msra.mxu0 %v1885
        %1923 = vmatprep.subr.bf16.mxu0 0
        %1924 = vmatpush1.bf16.msra.mxu0 %v1886
        %1925 = vmatprep.subr.bf16.mxu0 0
        %1926 = vmatpush1.bf16.msra.mxu0 %v1887
        %1927 = vmatprep.subr.bf16.mxu0 0
        %1928 = vmatpush1.bf16.msra.mxu0 %v1888
        %1929 = vmatprep.subr.bf16.mxu0 0
        %1930 = vmatpush1.bf16.msra.mxu0 %v1889
        %1931 = vmatprep.subr.bf16.mxu0 0
        %1932 = vmatpush1.bf16.msra.mxu0 %v1890
        %1933 = vmatprep.subr.bf16.mxu0 0
        %1934 = vmatpush1.bf16.msra.mxu0 %v1891
        %1935 = vmatprep.subr.bf16.mxu0 0
        %1936 = vmatpush1.bf16.msra.mxu0 %v1892
        %1937 = vmatprep.subr.bf16.mxu0 0
        %1938 = vmatpush1.bf16.msra.mxu0 %v1893
        %1939 = vmatprep.subr.bf16.mxu0 0
        %1940 = vmatpush1.bf16.msra.mxu0 %v1894
        %1941 = vmatprep.subr.bf16.mxu0 0
        %1942 = vmatpush1.bf16.msra.mxu0 %v1895
        %1943 = vmatprep.subr.bf16.mxu0 0
        %1944 = vmatpush1.bf16.msra.mxu0 %v1896
        %1945 = vmatprep.mubr.bf16.mxu0 %v1777
        %1946 = vmatmul.mubr.bf16.gmra.mrb[0].mxu0 %v1776
        %v1947 = vpop.f32.mrb[0].mxu0
        %v1948 = vadd.f32 %v1815, %v1947
        %v1949 = vpop.f32.mrb[0].mxu0
        %v1950 = vpop.f32.mrb[0].mxu0
        %v1951 = vpop.f32.mrb[0].mxu0
        %1952 = vdwg.mxu0
        %v1953 = vadd.f32 %v1623, %v1948
        %v1954 = vld [vmem:[%s730] sm:$0x1]
        %v1955 = vld [vmem:[%s733] sm:$0x1]
        %1956 = vadd.xlane.f32.xlu0 %v1953
        %v1957 = vpop.xlane.xlu0 %1956
        %v1958 = vmul.f32 %v1957, %v1593
        %v1959 = vsub.f32 %v1953, %v1958
        %v1960 = vmul.f32 %v1959, %v1959
        %1961 = vadd.xlane.f32.xlu0 %v1960
        %v1962 = vpop.xlane.xlu0 %1961
        %v1963 = vmul.f32 %v1962, 0.007874016
        %v1964 = vrsqrt.pop %v1963
        %v1965 = vmul.f32 %v1963, %v1964
        %vm1966 = vcmp.eq.f32.partialorder %v1963, inf
        %v1967 = vsel %vm1966, %v1963, %v1965
        %vm1968 = vcmp.eq.f32.partialorder %v1963, 0.0
        %v1969 = vand.u32 %v1963, 2147483648
        %v1970 = vsel %vm1968, %v1969, %v1967
        %v1971 = vadd.f32 %v1970, 1e-06
        %v1972 = vrcp.pop %v1971
        %v1974 = vlaneseq
        %v1975 = vshrl.u32 %v1974, 7
        %v1976 = vsub.s32 0, %v1975
        %v1977 = vrot.slane %v1954, %v1976
        %v1979 = vmul.f32 %v1977, %v1959
        %v1980 = vmul.f32 %v1979, %v1972
        %v1982 = vlaneseq
        %v1983 = vshrl.u32 %v1982, 7
        %v1984 = vsub.s32 0, %v1983
        %v1985 = vrot.slane %v1955, %v1984
        %v1987 = vadd.f32 %v1980, %v1985
        %p1988 = scmp.ne.s32.totalorder %s43, 1
        // Predicated region
        $region101: #{tpu_custom_call.1} parent=75 // pred_check
          %p1989 = pneg %p1988
        $region102: #{tpu_custom_call.1} parent=75 // pred_check_branch
          %1991 = sbr.rel (%p1989) target = $region104
        $region103: #{tpu_custom_call.1} parent=75 // pred_region
          %1992 = vst [vmem:[%s707] sm:$0xff] %v1987
        $region104: #{tpu_custom_call.1} parent=75 // pred_fallthru
          _
        %p1993 = scmp.eq.s32.totalorder %s43, 1
        // Predicated region
        $region105: #{tpu_custom_call.1} parent=75 // pred_check
          %p1994 = pneg %p1993
        $region106: #{tpu_custom_call.1} parent=75 // pred_check_branch
          %1996 = sbr.rel (%p1994) target = $region108
        $region107: #{tpu_custom_call.1} parent=75 // pred_region
          %v1997 = vld [vmem:[%s13] sm:$0x1]
          %v1998 = vld [vmem:[%s14] sm:$0x1]
          %1999 = vadd.xlane.f32.xlu0 %v1987
          %v2000 = vpop.xlane.xlu0 %1999
          %v2001 = vmul.f32 %v2000, %v1593
          %v2002 = vsub.f32 %v1987, %v2001
          %v2003 = vmul.f32 %v2002, %v2002
          %2004 = vadd.xlane.f32.xlu0 %v2003
          %v2005 = vpop.xlane.xlu0 %2004
          %v2006 = vmul.f32 %v2005, 0.007874016
          %v2007 = vrsqrt.pop %v2006
          %v2008 = vmul.f32 %v2006, %v2007
          %vm2009 = vcmp.eq.f32.partialorder %v2006, inf
          %v2010 = vsel %vm2009, %v2006, %v2008
          %vm2011 = vcmp.eq.f32.partialorder %v2006, 0.0
          %v2012 = vand.u32 %v2006, 2147483648
          %v2013 = vsel %vm2011, %v2012, %v2010
          %v2014 = vadd.f32 %v2013, 1e-06
          %v2015 = vrcp.pop %v2014
          %v2017 = vlaneseq
          %v2018 = vshrl.u32 %v2017, 7
          %v2019 = vsub.s32 0, %v2018
          %v2020 = vrot.slane %v1997, %v2019
          %v2022 = vmul.f32 %v2020, %v2002
          %v2023 = vmul.f32 %v2022, %v2015
          %v2025 = vlaneseq
          %v2026 = vshrl.u32 %v2025, 7
          %v2027 = vsub.s32 0, %v2026
          %v2028 = vrot.slane %v1998, %v2027
          %v2030 = vadd.f32 %v2023, %v2028
          %2031 = vst [vmem:[%s707] sm:$0xff] %v2030
        $region108: #{tpu_custom_call.1} parent=75 // pred_fallthru
          _
        %s2032 = sand.u32 %s412, 1
        %s2033 = scalar_lea.sflag [#allocation5], %s2032
        %s2034 = sand.u32 %s412, 1
        %s2035 = smul.addr %s2034, 8
        %s2036 = scalar_lea.vmem [#allocation11], %s2035
        // Predicated region
        $region109: #{tpu_custom_call.1} parent=75 // pred_check
          %p2037 = pneg %p422
        $region110: #{tpu_custom_call.1} parent=75 // pred_check_branch
          %2039 = sbr.rel (%p2037) target = $region112
        $region111: #{tpu_custom_call.1} parent=75 // pred_region
          %s2041 = ssub.s32 128, 128
          %2042 = vsyncadd %s2033, %s2041
          %s2043 = smul.addr %s42, 128
          %s2044 = scalar_lea.hbm %s15, %s2043
          %s2046 = sshll.u32 %s2036, 4
          %s2047 = int_to_ptr.vmem [resolvable:$true] %s2046
          %2049 = dma.vmem_to_hbm [thread:$0]  %s2047, 128, %s2044, %s2033
        $region112: #{tpu_custom_call.1} parent=75 // pred_fallthru
          _
      $region76: #{tpu_custom_call.1} parent=5 // pred_fallthru
        _
      %p2050 = scmp.le.s32.totalorder 2, %s33
      // Predicated region
      $region113: #{tpu_custom_call.1} parent=5 // pred_check
        %p2051 = pneg %p2050
      $region114: #{tpu_custom_call.1} parent=5 // pred_check_branch
        %2053 = sbr.rel (%p2051) target = $region116
      $region115: #{tpu_custom_call.1} parent=5 // pred_region
        %s2054 = ssub.s32 %s33, 2
        // Predicated region
        $region117: #{tpu_custom_call.1} parent=115 // pred_check
          %p2055 = pneg %p428
        $region118: #{tpu_custom_call.1} parent=115 // pred_check_branch
          %2057 = sbr.rel (%p2055) target = $region120
        $region119: #{tpu_custom_call.1} parent=115 // pred_region
          %s2058 = sand.u32 %s413, 1
          %s2059 = scalar_lea.sflag [#allocation5], %s2058
          %s2060 = sand.u32 %s413, 1
          %s2061 = smul.addr %s2060, 8
          %s2062 = scalar_lea.vmem [#allocation11], %s2061
          %2063 = dma.done %s2059, 128
        $region120: #{tpu_custom_call.1} parent=115 // pred_fallthru
          _
      $region116: #{tpu_custom_call.1} parent=5 // pred_fallthru
        _
    $region6: #{tpu_custom_call.1} parent=1 // loop_footer
      %s37 = sadd.s32 1, %s33
    $region7: #{tpu_custom_call.1} parent=1 // loop_footer_branch
      %32 = sbr.rel target = $region3
    $region8: #{tpu_custom_call.1} parent=1 // loop_exit
      _
    %2064 = vsyncpa [#allocation4], 1
    %s2065 = scalar_lea.sflag [#allocation4], 1
    %2066 = vsyncpa %s2065, 1
    %2067 = vsyncpa [#allocation7], 1
    %s2068 = scalar_lea.sflag [#allocation7], 1
    %2069 = vsyncpa %s2068, 1
    %2070 = vsyncpa [#allocation10], 1
    %s2071 = scalar_lea.sflag [#allocation10], 1
    %2072 = vsyncpa %s2071, 1
    %2073 = vsyncpa [#allocation5], 1
    %s2074 = scalar_lea.sflag [#allocation5], 1
    %2075 = vsyncpa %s2074, 1
  %2076 = vsyncmov [#allocation2]
  %s2077 = vpop.sfrf %2076
  %p2078 = scmp.eq.s32.totalorder %s2077, 0
  %p2079 = pneg %p2078
  %2081 = shalt.err (%p2079)

</llo_original>
